<compile_context>
chip_gen: v7x
topology: tpu7x:2x2x1
jax: 0.10.0
libtpu: 0.0.40
codegen_flags: <defaults>
</compile_context>

<pallas_src>
import jax
import jax.numpy as jnp
from jax.experimental import pallas as pl
from jax.experimental.pallas import tpu as pltpu

INPUT_SIZE = 64     # vocabulary size
HIDDEN_SIZE = 32
SEQ_LEN = 8
GATE_STRIDE = 128   # each GRU gate (r|z|n) occupies a full 128-lane slot


def _encoder_gru_kernel(tok_ref, emb_ref, h0_ref, w_ref, b_ref,
                        out_ref, hid_ref, x_scratch):
    """Whole-sequence GRU encoder.

    tok_ref  : (S,)       int32  SMEM (scalar prefetch) token ids
    emb_ref  : (V, H)     f32    VMEM embedding table
    h0_ref   : (1, H)     f32    initial hidden state
    w_ref    : (2H, 3G)   bf16   [W_ih ; W_hh], gates 128-lane aligned (r | z | n)
    b_ref    : (2, 3G)    f32    [b_ih ; b_hh], same lane layout
    out_ref  : (S, H)     f32    per-step GRU outputs (== hidden states)
    hid_ref  : (1, H)     f32    final hidden state
    x_scratch: (S, H)     f32    gathered embeddings
    """
    H = HIDDEN_SIZE
    G = GATE_STRIDE
    S = out_ref.shape[0]

    # ---- prologue: in-kernel embedding gather (off the serial h-chain) -------------
    for t in range(S):
        x_scratch[t:t + 1, :] = emb_ref[pl.ds(tok_ref[t], 1), :]

    # Static slices of the resident VMEM weight slab (free).
    w_i = w_ref[0:H, :]            # (H, 3G) bf16   x-path weights
    w_h = w_ref[H:2 * H, :]        # (H, 3G) bf16   h-path weights
    b_i = b_ref[0:1, :]            # (1, 3G) f32
    b_h = b_ref[1:2, :]            # (1, 3G) f32

    # Hoisted x-path: one (S,H)@(H,3G) MXU pass for all time steps (no h dependence).
    x_all = x_scratch[...].astype(jnp.bfloat16)                       # (S, H)
    gi_all = jnp.dot(x_all, w_i,
                     preferred_element_type=jnp.float32) + b_i        # (S, 3G) f32

    h = h0_ref[...]                                                   # (1, H) f32

    # Static unroll: tiny trip count, keeps every slice index static and gives the
    # scheduler full visibility of the serial chain.
    for t in range(S):
        gi = gi_all[t:t + 1, :]                                        # (1, 3G) f32

        # Only matmul left on the critical path: h @ W_hh (bf16 MXU, f32 acc).
        gh = jnp.dot(h.astype(jnp.bfloat16), w_h,
                     preferred_element_type=jnp.float32) + b_h         # (1, 3G) f32

        # Fused r/z sigmoid: one EUP round-trip over the first two 128-lane gates.
        rz = jax.nn.sigmoid(gi[:, 0:2 * G] + gh[:, 0:2 * G])           # (1, 2G)

        # All slice starts are multiples of 128 -> no lane rotates.
        r = rz[:, 0:H]                                                 # (1, H)
        z = rz[:, G:G + H]                                             # (1, H)
        i_n = gi[:, 2 * G:2 * G + H]                                   # (1, H)
        h_n = gh[:, 2 * G:2 * G + H]                                   # (1, H)

        # PyTorch nn.GRU cell semantics, f32 elementwise path (v5e-safe).
        n = jnp.tanh(i_n + r * h_n)
        h = (1.0 - z) * n + z * h                                      # (1, H) f32

        out_ref[t:t + 1, :] = h

    hid_ref[...] = h


@jax.jit
def encoder_rnn_forward(tokens, h0, emb_table, w_slab, b_slab):
    """Encoder over a token sequence.

    tokens : (S,) int32 ; h0 : (1, H) f32.
    Returns (outputs (S, H), final_hidden (1, H)) — for a 1-layer GRU,
    output_t == hidden_t at every step, matching the PyTorch module.
    """
    S = tokens.shape[0]
    vmem = pl.BlockSpec(memory_space=pltpu.MemorySpace.VMEM)

    grid_spec = pltpu.PrefetchScalarGridSpec(
        num_scalar_prefetch=1,                  # tokens -> SMEM, first kernel arg
        grid=(1,),
        in_specs=[vmem, vmem, vmem, vmem],      # emb_table, h0, w_slab, b_slab
        out_specs=[vmem, vmem],                 # outputs, final hidden
        scratch_shapes=[pltpu.VMEM((S, HIDDEN_SIZE), jnp.float32)],
    )

    outputs, hidden = pl.pallas_call(
        _encoder_gru_kernel,
        out_shape=(jax.ShapeDtypeStruct((S, HIDDEN_SIZE), jnp.float32),
                   jax.ShapeDtypeStruct((1, HIDDEN_SIZE), jnp.float32)),
        grid_spec=grid_spec,
        compiler_params=pltpu.CompilerParams(
            dimension_semantics=("arbitrary",)),
    )(tokens, emb_table, h0, w_slab, b_slab)

    return outputs, hidden


def init_params(key, input_size, hidden_size):
    ks = jax.random.split(key, 5)
    s = 0.1

    def mk(k, shape):
        return (s * jax.random.normal(k, shape)).astype(jnp.float32)

    embedding = mk(ks[0], (input_size, hidden_size))          # (V, H)
    w_ih = mk(ks[1], (hidden_size, 3 * hidden_size))          # x-path, cols r|z|n
    w_hh = mk(ks[2], (hidden_size, 3 * hidden_size))          # h-path, cols r|z|n
    b_ih = mk(ks[3], (1, 3 * hidden_size))
    b_hh = mk(ks[4], (1, 3 * hidden_size))
    return embedding, w_ih, w_hh, b_ih, b_hh


def pack_params(embedding, w_ih, w_hh, b_ih, b_hh):
    """Pack params into the kernel's lane-padded slabs.

    w_slab : (2H, 3*128) bf16, rows [0:H)=W_ih, [H:2H)=W_hh; gate g occupies lane
             columns [g*128, g*128+H), remaining lanes zero.
    b_slab : (2, 3*128) f32, same lane layout.
    emb    : (V, H) f32 (gathered in-kernel; f32 rows keep dynamic slicing simple).
    """
    H = HIDDEN_SIZE
    G = GATE_STRIDE
    emb_table = embedding.astype(jnp.float32)

    w_slab = jnp.zeros((2 * H, 3 * G), jnp.float32)
    b_slab = jnp.zeros((2, 3 * G), jnp.float32)
    for g in range(3):
        w_slab = w_slab.at[0:H, g * G:g * G + H].set(w_ih[:, g * H:(g + 1) * H])
        w_slab = w_slab.at[H:2 * H, g * G:g * G + H].set(w_hh[:, g * H:(g + 1) * H])
        b_slab = b_slab.at[0:1, g * G:g * G + H].set(b_ih[:, g * H:(g + 1) * H])
        b_slab = b_slab.at[1:2, g * G:g * G + H].set(b_hh[:, g * H:(g + 1) * H])

    return emb_table, w_slab.astype(jnp.bfloat16), b_slab.astype(jnp.float32)


def reference_forward(tokens, h0, embedding, w_ih, w_hh, b_ih, b_hh):
    """Pure-JAX f32 reference replicating the PyTorch EncoderRNN over a sequence."""
    H = embedding.shape[1]
    emb_seq = embedding[tokens]
    h = h0
    outs = []
    for t in range(tokens.shape[0]):
        x = emb_seq[t:t + 1, :]
        gi = x @ w_ih + b_ih
        gh = h @ w_hh + b_hh
        i_r, i_z, i_n = gi[:, 0:H], gi[:, H:2 * H], gi[:, 2 * H:3 * H]
        h_r, h_z, h_n = gh[:, 0:H], gh[:, H:2 * H], gh[:, 2 * H:3 * H]
        r = jax.nn.sigmoid(i_r + h_r)
        z = jax.nn.sigmoid(i_z + h_z)
        n = jnp.tanh(i_n + r * h_n)
        h = (1.0 - z) * n + z * h
        outs.append(h)
    return jnp.concatenate(outs, axis=0), h


if __name__ == "__main__":
    key = jax.random.PRNGKey(0)
    k_param, k_tok = jax.random.split(key)

    embedding, w_ih, w_hh, b_ih, b_hh = init_params(k_param, INPUT_SIZE, HIDDEN_SIZE)
    emb_table, w_slab, b_slab = pack_params(embedding, w_ih, w_hh, b_ih, b_hh)

    tokens = jax.random.randint(k_tok, (SEQ_LEN,), 0, INPUT_SIZE, dtype=jnp.int32)
    h0 = jnp.zeros((1, HIDDEN_SIZE), jnp.float32)       # EncoderRNN.initHidden()

    outputs, hidden = encoder_rnn_forward(tokens, h0, emb_table, w_slab, b_slab)
    jax.block_until_ready((outputs, hidden))

    ref_out, ref_h = reference_forward(tokens, h0, embedding, w_ih, w_hh, b_ih, b_hh)

    assert outputs.shape == (SEQ_LEN, HIDDEN_SIZE)
    assert hidden.shape == (1, HIDDEN_SIZE)
    # bf16 MXU weights (f32 accumulation) give ~1e-4-level deviations vs. the pure-f32
    # reference at S=8; 5e-3 is a comfortable bound at these magnitudes.
    assert jnp.allclose(outputs, ref_out, atol=5e-3), "encoder outputs mismatch"
    assert jnp.allclose(hidden, ref_h, atol=5e-3), "final hidden mismatch"

    print("KERNEL_OK")
</pallas_src>

<mosaic_0001>
module attributes {stable_mosaic.version = 11 : i64} {
  func.func @_encoder_gru_kernel(%arg0: i32, %arg1: memref<8xi32, #tpu.memory_space<smem>>, %arg2: memref<64x32xf32, #tpu.memory_space<vmem>>, %arg3: memref<1x32xf32, #tpu.memory_space<vmem>>, %arg4: memref<64x384xbf16, #tpu.memory_space<vmem>>, %arg5: memref<2x384xf32, #tpu.memory_space<vmem>>, %arg6: memref<8x32xf32, #tpu.memory_space<vmem>>, %arg7: memref<1x32xf32, #tpu.memory_space<vmem>>, %arg8: memref<8x32xf32, #tpu.memory_space<vmem>>) attributes {dimension_semantics = [#tpu.dimension_semantics<arbitrary>], iteration_bounds = array<i64: 1>, scalar_prefetch = 1 : i64, scratch_operands = 1 : i64, tpu.core_type = #tpu.core_type<tc>, window_params = [{pipeline_mode = #tpu.pipeline_mode<synchronous>, transform_indices = @transform_0, window_bounds = array<i64: 64, 32>}, {pipeline_mode = #tpu.pipeline_mode<synchronous>, transform_indices = @transform_1, window_bounds = array<i64: 1, 32>}, {pipeline_mode = #tpu.pipeline_mode<synchronous>, transform_indices = @transform_2, window_bounds = array<i64: 64, 384>}, {pipeline_mode = #tpu.pipeline_mode<synchronous>, transform_indices = @transform_3, window_bounds = array<i64: 2, 384>}, {pipeline_mode = #tpu.pipeline_mode<synchronous>, transform_indices = @transform_4, window_bounds = array<i64: 8, 32>}, {pipeline_mode = #tpu.pipeline_mode<synchronous>, transform_indices = @transform_5, window_bounds = array<i64: 1, 32>}]} {
    %c0 = arith.constant 0 : index
    %0 = memref.load %arg1[%c0] : memref<8xi32, #tpu.memory_space<smem>>
    %1 = arith.index_cast %0 : i32 to index
    %c0_0 = arith.constant 0 : index
    %2 = vector.load %arg2[%1, %c0_0] : memref<64x32xf32, #tpu.memory_space<vmem>>, vector<1x32xf32>
    %c0_1 = arith.constant 0 : index
    %c0_2 = arith.constant 0 : index
    %3 = vector.load %arg8[%c0_1, %c0_2] : memref<8x32xf32, #tpu.memory_space<vmem>>, vector<1x32xf32>
    tpu.vector_store %arg8[%c0_1, %c0_2], %2 {strides = array<i32>} : memref<8x32xf32, #tpu.memory_space<vmem>>, vector<1x32xf32>,
    %c1 = arith.constant 1 : index
    %4 = memref.load %arg1[%c1] : memref<8xi32, #tpu.memory_space<smem>>
    %5 = arith.index_cast %4 : i32 to index
    %c0_3 = arith.constant 0 : index
    %6 = vector.load %arg2[%5, %c0_3] : memref<64x32xf32, #tpu.memory_space<vmem>>, vector<1x32xf32>
    %c1_4 = arith.constant 1 : index
    %c0_5 = arith.constant 0 : index
    %7 = vector.load %arg8[%c1_4, %c0_5] : memref<8x32xf32, #tpu.memory_space<vmem>>, vector<1x32xf32>
    tpu.vector_store %arg8[%c1_4, %c0_5], %6 {strides = array<i32>} : memref<8x32xf32, #tpu.memory_space<vmem>>, vector<1x32xf32>,
    %c2 = arith.constant 2 : index
    %8 = memref.load %arg1[%c2] : memref<8xi32, #tpu.memory_space<smem>>
    %9 = arith.index_cast %8 : i32 to index
    %c0_6 = arith.constant 0 : index
    %10 = vector.load %arg2[%9, %c0_6] : memref<64x32xf32, #tpu.memory_space<vmem>>, vector<1x32xf32>
    %c2_7 = arith.constant 2 : index
    %c0_8 = arith.constant 0 : index
    %11 = vector.load %arg8[%c2_7, %c0_8] : memref<8x32xf32, #tpu.memory_space<vmem>>, vector<1x32xf32>
    tpu.vector_store %arg8[%c2_7, %c0_8], %10 {strides = array<i32>} : memref<8x32xf32, #tpu.memory_space<vmem>>, vector<1x32xf32>,
    %c3 = arith.constant 3 : index
    %12 = memref.load %arg1[%c3] : memref<8xi32, #tpu.memory_space<smem>>
    %13 = arith.index_cast %12 : i32 to index
    %c0_9 = arith.constant 0 : index
    %14 = vector.load %arg2[%13, %c0_9] : memref<64x32xf32, #tpu.memory_space<vmem>>, vector<1x32xf32>
    %c3_10 = arith.constant 3 : index
    %c0_11 = arith.constant 0 : index
    %15 = vector.load %arg8[%c3_10, %c0_11] : memref<8x32xf32, #tpu.memory_space<vmem>>, vector<1x32xf32>
    tpu.vector_store %arg8[%c3_10, %c0_11], %14 {strides = array<i32>} : memref<8x32xf32, #tpu.memory_space<vmem>>, vector<1x32xf32>,
    %c4 = arith.constant 4 : index
    %16 = memref.load %arg1[%c4] : memref<8xi32, #tpu.memory_space<smem>>
    %17 = arith.index_cast %16 : i32 to index
    %c0_12 = arith.constant 0 : index
    %18 = vector.load %arg2[%17, %c0_12] : memref<64x32xf32, #tpu.memory_space<vmem>>, vector<1x32xf32>
    %c4_13 = arith.constant 4 : index
    %c0_14 = arith.constant 0 : index
    %19 = vector.load %arg8[%c4_13, %c0_14] : memref<8x32xf32, #tpu.memory_space<vmem>>, vector<1x32xf32>
    tpu.vector_store %arg8[%c4_13, %c0_14], %18 {strides = array<i32>} : memref<8x32xf32, #tpu.memory_space<vmem>>, vector<1x32xf32>,
    %c5 = arith.constant 5 : index
    %20 = memref.load %arg1[%c5] : memref<8xi32, #tpu.memory_space<smem>>
    %21 = arith.index_cast %20 : i32 to index
    %c0_15 = arith.constant 0 : index
    %22 = vector.load %arg2[%21, %c0_15] : memref<64x32xf32, #tpu.memory_space<vmem>>, vector<1x32xf32>
    %c5_16 = arith.constant 5 : index
    %c0_17 = arith.constant 0 : index
    %23 = vector.load %arg8[%c5_16, %c0_17] : memref<8x32xf32, #tpu.memory_space<vmem>>, vector<1x32xf32>
    tpu.vector_store %arg8[%c5_16, %c0_17], %22 {strides = array<i32>} : memref<8x32xf32, #tpu.memory_space<vmem>>, vector<1x32xf32>,
    %c6 = arith.constant 6 : index
    %24 = memref.load %arg1[%c6] : memref<8xi32, #tpu.memory_space<smem>>
    %25 = arith.index_cast %24 : i32 to index
    %c0_18 = arith.constant 0 : index
    %26 = vector.load %arg2[%25, %c0_18] : memref<64x32xf32, #tpu.memory_space<vmem>>, vector<1x32xf32>
    %c6_19 = arith.constant 6 : index
    %c0_20 = arith.constant 0 : index
    %27 = vector.load %arg8[%c6_19, %c0_20] : memref<8x32xf32, #tpu.memory_space<vmem>>, vector<1x32xf32>
    tpu.vector_store %arg8[%c6_19, %c0_20], %26 {strides = array<i32>} : memref<8x32xf32, #tpu.memory_space<vmem>>, vector<1x32xf32>,
    %c7 = arith.constant 7 : index
    %28 = memref.load %arg1[%c7] : memref<8xi32, #tpu.memory_space<smem>>
    %29 = arith.index_cast %28 : i32 to index
    %c0_21 = arith.constant 0 : index
    %30 = vector.load %arg2[%29, %c0_21] : memref<64x32xf32, #tpu.memory_space<vmem>>, vector<1x32xf32>
    %c7_22 = arith.constant 7 : index
    %c0_23 = arith.constant 0 : index
    %31 = vector.load %arg8[%c7_22, %c0_23] : memref<8x32xf32, #tpu.memory_space<vmem>>, vector<1x32xf32>
    tpu.vector_store %arg8[%c7_22, %c0_23], %30 {strides = array<i32>} : memref<8x32xf32, #tpu.memory_space<vmem>>, vector<1x32xf32>,
    %c0_24 = arith.constant 0 : index
    %c0_25 = arith.constant 0 : index
    %32 = vector.load %arg4[%c0_24, %c0_25] : memref<64x384xbf16, #tpu.memory_space<vmem>>, vector<32x384xbf16>
    %c32 = arith.constant 32 : index
    %c0_26 = arith.constant 0 : index
    %33 = vector.load %arg4[%c32, %c0_26] : memref<64x384xbf16, #tpu.memory_space<vmem>>, vector<32x384xbf16>
    %c0_27 = arith.constant 0 : index
    %c0_28 = arith.constant 0 : index
    %34 = vector.load %arg5[%c0_27, %c0_28] : memref<2x384xf32, #tpu.memory_space<vmem>>, vector<1x384xf32>
    %c1_29 = arith.constant 1 : index
    %c0_30 = arith.constant 0 : index
    %35 = vector.load %arg5[%c1_29, %c0_30] : memref<2x384xf32, #tpu.memory_space<vmem>>, vector<1x384xf32>
    %c0_31 = arith.constant 0 : index
    %c0_32 = arith.constant 0 : index
    %36 = vector.load %arg8[%c0_31, %c0_32] : memref<8x32xf32, #tpu.memory_space<vmem>>, vector<8x32xf32>
    %37 = arith.truncf %36 : vector<8x32xf32> to vector<8x32xbf16>
    %cst = arith.constant dense<0.000000e+00> : vector<8x384xf32>
    %38 = tpu.matmul %37, %32, %cst {dimension_numbers = #tpu.dot_dimension_numbers<[1], [0], [0], [1], [0, 0, 1, 1], [], []>} : vector<8x32xbf16>, vector<32x384xbf16>, vector<8x384xf32> -> vector<8x384xf32>
    %39 = vector.broadcast %34 : vector<1x384xf32> to vector<8x384xf32>
    %40 = arith.addf %38, %39 : vector<8x384xf32>
    %c0_33 = arith.constant 0 : index
    %c0_34 = arith.constant 0 : index
    %41 = vector.load %arg3[%c0_33, %c0_34] : memref<1x32xf32, #tpu.memory_space<vmem>>, vector<1x32xf32>
    %42 = vector.extract_strided_slice %40 {offsets = [0, 0], sizes = [1, 384], strides = [1, 1]} : vector<8x384xf32> to vector<1x384xf32>
    %43 = arith.truncf %41 : vector<1x32xf32> to vector<1x32xbf16>
    %cst_35 = arith.constant dense<0.000000e+00> : vector<1x384xf32>
    %44 = tpu.matmul %43, %33, %cst_35 {dimension_numbers = #tpu.dot_dimension_numbers<[1], [0], [0], [1], [0, 0, 1, 1], [], []>} : vector<1x32xbf16>, vector<32x384xbf16>, vector<1x384xf32> -> vector<1x384xf32>
    %45 = arith.addf %44, %35 : vector<1x384xf32>
    %46 = vector.extract_strided_slice %42 {offsets = [0, 0], sizes = [1, 256], strides = [1, 1]} : vector<1x384xf32> to vector<1x256xf32>
    %47 = vector.extract_strided_slice %45 {offsets = [0, 0], sizes = [1, 256], strides = [1, 1]} : vector<1x384xf32> to vector<1x256xf32>
    %48 = arith.addf %46, %47 : vector<1x256xf32>
    %49 = arith.negf %48 : vector<1x256xf32>
    %50 = math.exp %49 : vector<1x256xf32>
    %cst_36 = arith.constant 1.000000e+00 : f32
    %51 = vector.broadcast %cst_36 : f32 to vector<1x256xf32>
    %52 = arith.addf %51, %50 : vector<1x256xf32>
    %53 = arith.divf %51, %52 : vector<1x256xf32>
    %54 = vector.extract_strided_slice %53 {offsets = [0, 0], sizes = [1, 32], strides = [1, 1]} : vector<1x256xf32> to vector<1x32xf32>
    %55 = vector.extract_strided_slice %53 {offsets = [0, 128], sizes = [1, 32], strides = [1, 1]} : vector<1x256xf32> to vector<1x32xf32>
    %56 = vector.extract_strided_slice %42 {offsets = [0, 256], sizes = [1, 32], strides = [1, 1]} : vector<1x384xf32> to vector<1x32xf32>
    %57 = vector.extract_strided_slice %45 {offsets = [0, 256], sizes = [1, 32], strides = [1, 1]} : vector<1x384xf32> to vector<1x32xf32>
    %58 = arith.mulf %54, %57 : vector<1x32xf32>
    %59 = arith.addf %56, %58 : vector<1x32xf32>
    %60 = math.tanh %59 : vector<1x32xf32>
    %cst_37 = arith.constant 1.000000e+00 : f32
    %61 = vector.broadcast %cst_37 : f32 to vector<1x32xf32>
    %62 = arith.subf %61, %55 : vector<1x32xf32>
    %63 = arith.mulf %62, %60 : vector<1x32xf32>
    %64 = arith.mulf %55, %41 : vector<1x32xf32>
    %65 = arith.addf %63, %64 : vector<1x32xf32>
    %c0_38 = arith.constant 0 : index
    %c0_39 = arith.constant 0 : index
    %66 = vector.load %arg6[%c0_38, %c0_39] : memref<8x32xf32, #tpu.memory_space<vmem>>, vector<1x32xf32>
    tpu.vector_store %arg6[%c0_38, %c0_39], %65 {strides = array<i32>} : memref<8x32xf32, #tpu.memory_space<vmem>>, vector<1x32xf32>,
    %67 = vector.extract_strided_slice %40 {offsets = [1, 0], sizes = [1, 384], strides = [1, 1]} : vector<8x384xf32> to vector<1x384xf32>
    %68 = arith.truncf %65 : vector<1x32xf32> to vector<1x32xbf16>
    %cst_40 = arith.constant dense<0.000000e+00> : vector<1x384xf32>
    %69 = tpu.matmul %68, %33, %cst_40 {dimension_numbers = #tpu.dot_dimension_numbers<[1], [0], [0], [1], [0, 0, 1, 1], [], []>} : vector<1x32xbf16>, vector<32x384xbf16>, vector<1x384xf32> -> vector<1x384xf32>
    %70 = arith.addf %69, %35 : vector<1x384xf32>
    %71 = vector.extract_strided_slice %67 {offsets = [0, 0], sizes = [1, 256], strides = [1, 1]} : vector<1x384xf32> to vector<1x256xf32>
    %72 = vector.extract_strided_slice %70 {offsets = [0, 0], sizes = [1, 256], strides = [1, 1]} : vector<1x384xf32> to vector<1x256xf32>
    %73 = arith.addf %71, %72 : vector<1x256xf32>
    %74 = arith.negf %73 : vector<1x256xf32>
    %75 = math.exp %74 : vector<1x256xf32>
    %cst_41 = arith.constant 1.000000e+00 : f32
    %76 = vector.broadcast %cst_41 : f32 to vector<1x256xf32>
    %77 = arith.addf %76, %75 : vector<1x256xf32>
    %78 = arith.divf %76, %77 : vector<1x256xf32>
    %79 = vector.extract_strided_slice %78 {offsets = [0, 0], sizes = [1, 32], strides = [1, 1]} : vector<1x256xf32> to vector<1x32xf32>
    %80 = vector.extract_strided_slice %78 {offsets = [0, 128], sizes = [1, 32], strides = [1, 1]} : vector<1x256xf32> to vector<1x32xf32>
    %81 = vector.extract_strided_slice %67 {offsets = [0, 256], sizes = [1, 32], strides = [1, 1]} : vector<1x384xf32> to vector<1x32xf32>
    %82 = vector.extract_strided_slice %70 {offsets = [0, 256], sizes = [1, 32], strides = [1, 1]} : vector<1x384xf32> to vector<1x32xf32>
    %83 = arith.mulf %79, %82 : vector<1x32xf32>
    %84 = arith.addf %81, %83 : vector<1x32xf32>
    %85 = math.tanh %84 : vector<1x32xf32>
    %cst_42 = arith.constant 1.000000e+00 : f32
    %86 = vector.broadcast %cst_42 : f32 to vector<1x32xf32>
    %87 = arith.subf %86, %80 : vector<1x32xf32>
    %88 = arith.mulf %87, %85 : vector<1x32xf32>
    %89 = arith.mulf %80, %65 : vector<1x32xf32>
    %90 = arith.addf %88, %89 : vector<1x32xf32>
    %c1_43 = arith.constant 1 : index
    %c0_44 = arith.constant 0 : index
    %91 = vector.load %arg6[%c1_43, %c0_44] : memref<8x32xf32, #tpu.memory_space<vmem>>, vector<1x32xf32>
    tpu.vector_store %arg6[%c1_43, %c0_44], %90 {strides = array<i32>} : memref<8x32xf32, #tpu.memory_space<vmem>>, vector<1x32xf32>,
    %92 = vector.extract_strided_slice %40 {offsets = [2, 0], sizes = [1, 384], strides = [1, 1]} : vector<8x384xf32> to vector<1x384xf32>
    %93 = arith.truncf %90 : vector<1x32xf32> to vector<1x32xbf16>
    %cst_45 = arith.constant dense<0.000000e+00> : vector<1x384xf32>
    %94 = tpu.matmul %93, %33, %cst_45 {dimension_numbers = #tpu.dot_dimension_numbers<[1], [0], [0], [1], [0, 0, 1, 1], [], []>} : vector<1x32xbf16>, vector<32x384xbf16>, vector<1x384xf32> -> vector<1x384xf32>
    %95 = arith.addf %94, %35 : vector<1x384xf32>
    %96 = vector.extract_strided_slice %92 {offsets = [0, 0], sizes = [1, 256], strides = [1, 1]} : vector<1x384xf32> to vector<1x256xf32>
    %97 = vector.extract_strided_slice %95 {offsets = [0, 0], sizes = [1, 256], strides = [1, 1]} : vector<1x384xf32> to vector<1x256xf32>
    %98 = arith.addf %96, %97 : vector<1x256xf32>
    %99 = arith.negf %98 : vector<1x256xf32>
    %100 = math.exp %99 : vector<1x256xf32>
    %cst_46 = arith.constant 1.000000e+00 : f32
    %101 = vector.broadcast %cst_46 : f32 to vector<1x256xf32>
    %102 = arith.addf %101, %100 : vector<1x256xf32>
    %103 = arith.divf %101, %102 : vector<1x256xf32>
    %104 = vector.extract_strided_slice %103 {offsets = [0, 0], sizes = [1, 32], strides = [1, 1]} : vector<1x256xf32> to vector<1x32xf32>
    %105 = vector.extract_strided_slice %103 {offsets = [0, 128], sizes = [1, 32], strides = [1, 1]} : vector<1x256xf32> to vector<1x32xf32>
    %106 = vector.extract_strided_slice %92 {offsets = [0, 256], sizes = [1, 32], strides = [1, 1]} : vector<1x384xf32> to vector<1x32xf32>
    %107 = vector.extract_strided_slice %95 {offsets = [0, 256], sizes = [1, 32], strides = [1, 1]} : vector<1x384xf32> to vector<1x32xf32>
    %108 = arith.mulf %104, %107 : vector<1x32xf32>
    %109 = arith.addf %106, %108 : vector<1x32xf32>
    %110 = math.tanh %109 : vector<1x32xf32>
    %cst_47 = arith.constant 1.000000e+00 : f32
    %111 = vector.broadcast %cst_47 : f32 to vector<1x32xf32>
    %112 = arith.subf %111, %105 : vector<1x32xf32>
    %113 = arith.mulf %112, %110 : vector<1x32xf32>
    %114 = arith.mulf %105, %90 : vector<1x32xf32>
    %115 = arith.addf %113, %114 : vector<1x32xf32>
    %c2_48 = arith.constant 2 : index
    %c0_49 = arith.constant 0 : index
    %116 = vector.load %arg6[%c2_48, %c0_49] : memref<8x32xf32, #tpu.memory_space<vmem>>, vector<1x32xf32>
    tpu.vector_store %arg6[%c2_48, %c0_49], %115 {strides = array<i32>} : memref<8x32xf32, #tpu.memory_space<vmem>>, vector<1x32xf32>,
    %117 = vector.extract_strided_slice %40 {offsets = [3, 0], sizes = [1, 384], strides = [1, 1]} : vector<8x384xf32> to vector<1x384xf32>
    %118 = arith.truncf %115 : vector<1x32xf32> to vector<1x32xbf16>
    %cst_50 = arith.constant dense<0.000000e+00> : vector<1x384xf32>
    %119 = tpu.matmul %118, %33, %cst_50 {dimension_numbers = #tpu.dot_dimension_numbers<[1], [0], [0], [1], [0, 0, 1, 1], [], []>} : vector<1x32xbf16>, vector<32x384xbf16>, vector<1x384xf32> -> vector<1x384xf32>
    %120 = arith.addf %119, %35 : vector<1x384xf32>
    %121 = vector.extract_strided_slice %117 {offsets = [0, 0], sizes = [1, 256], strides = [1, 1]} : vector<1x384xf32> to vector<1x256xf32>
    %122 = vector.extract_strided_slice %120 {offsets = [0, 0], sizes = [1, 256], strides = [1, 1]} : vector<1x384xf32> to vector<1x256xf32>
    %123 = arith.addf %121, %122 : vector<1x256xf32>
    %124 = arith.negf %123 : vector<1x256xf32>
    %125 = math.exp %124 : vector<1x256xf32>
    %cst_51 = arith.constant 1.000000e+00 : f32
    %126 = vector.broadcast %cst_51 : f32 to vector<1x256xf32>
    %127 = arith.addf %126, %125 : vector<1x256xf32>
    %128 = arith.divf %126, %127 : vector<1x256xf32>
    %129 = vector.extract_strided_slice %128 {offsets = [0, 0], sizes = [1, 32], strides = [1, 1]} : vector<1x256xf32> to vector<1x32xf32>
    %130 = vector.extract_strided_slice %128 {offsets = [0, 128], sizes = [1, 32], strides = [1, 1]} : vector<1x256xf32> to vector<1x32xf32>
    %131 = vector.extract_strided_slice %117 {offsets = [0, 256], sizes = [1, 32], strides = [1, 1]} : vector<1x384xf32> to vector<1x32xf32>
    %132 = vector.extract_strided_slice %120 {offsets = [0, 256], sizes = [1, 32], strides = [1, 1]} : vector<1x384xf32> to vector<1x32xf32>
    %133 = arith.mulf %129, %132 : vector<1x32xf32>
    %134 = arith.addf %131, %133 : vector<1x32xf32>
    %135 = math.tanh %134 : vector<1x32xf32>
    %cst_52 = arith.constant 1.000000e+00 : f32
    %136 = vector.broadcast %cst_52 : f32 to vector<1x32xf32>
    %137 = arith.subf %136, %130 : vector<1x32xf32>
    %138 = arith.mulf %137, %135 : vector<1x32xf32>
    %139 = arith.mulf %130, %115 : vector<1x32xf32>
    %140 = arith.addf %138, %139 : vector<1x32xf32>
    %c3_53 = arith.constant 3 : index
    %c0_54 = arith.constant 0 : index
    %141 = vector.load %arg6[%c3_53, %c0_54] : memref<8x32xf32, #tpu.memory_space<vmem>>, vector<1x32xf32>
    tpu.vector_store %arg6[%c3_53, %c0_54], %140 {strides = array<i32>} : memref<8x32xf32, #tpu.memory_space<vmem>>, vector<1x32xf32>,
    %142 = vector.extract_strided_slice %40 {offsets = [4, 0], sizes = [1, 384], strides = [1, 1]} : vector<8x384xf32> to vector<1x384xf32>
    %143 = arith.truncf %140 : vector<1x32xf32> to vector<1x32xbf16>
    %cst_55 = arith.constant dense<0.000000e+00> : vector<1x384xf32>
    %144 = tpu.matmul %143, %33, %cst_55 {dimension_numbers = #tpu.dot_dimension_numbers<[1], [0], [0], [1], [0, 0, 1, 1], [], []>} : vector<1x32xbf16>, vector<32x384xbf16>, vector<1x384xf32> -> vector<1x384xf32>
    %145 = arith.addf %144, %35 : vector<1x384xf32>
    %146 = vector.extract_strided_slice %142 {offsets = [0, 0], sizes = [1, 256], strides = [1, 1]} : vector<1x384xf32> to vector<1x256xf32>
    %147 = vector.extract_strided_slice %145 {offsets = [0, 0], sizes = [1, 256], strides = [1, 1]} : vector<1x384xf32> to vector<1x256xf32>
    %148 = arith.addf %146, %147 : vector<1x256xf32>
    %149 = arith.negf %148 : vector<1x256xf32>
    %150 = math.exp %149 : vector<1x256xf32>
    %cst_56 = arith.constant 1.000000e+00 : f32
    %151 = vector.broadcast %cst_56 : f32 to vector<1x256xf32>
    %152 = arith.addf %151, %150 : vector<1x256xf32>
    %153 = arith.divf %151, %152 : vector<1x256xf32>
    %154 = vector.extract_strided_slice %153 {offsets = [0, 0], sizes = [1, 32], strides = [1, 1]} : vector<1x256xf32> to vector<1x32xf32>
    %155 = vector.extract_strided_slice %153 {offsets = [0, 128], sizes = [1, 32], strides = [1, 1]} : vector<1x256xf32> to vector<1x32xf32>
    %156 = vector.extract_strided_slice %142 {offsets = [0, 256], sizes = [1, 32], strides = [1, 1]} : vector<1x384xf32> to vector<1x32xf32>
    %157 = vector.extract_strided_slice %145 {offsets = [0, 256], sizes = [1, 32], strides = [1, 1]} : vector<1x384xf32> to vector<1x32xf32>
    %158 = arith.mulf %154, %157 : vector<1x32xf32>
    %159 = arith.addf %156, %158 : vector<1x32xf32>
    %160 = math.tanh %159 : vector<1x32xf32>
    %cst_57 = arith.constant 1.000000e+00 : f32
    %161 = vector.broadcast %cst_57 : f32 to vector<1x32xf32>
    %162 = arith.subf %161, %155 : vector<1x32xf32>
    %163 = arith.mulf %162, %160 : vector<1x32xf32>
    %164 = arith.mulf %155, %140 : vector<1x32xf32>
    %165 = arith.addf %163, %164 : vector<1x32xf32>
    %c4_58 = arith.constant 4 : index
    %c0_59 = arith.constant 0 : index
    %166 = vector.load %arg6[%c4_58, %c0_59] : memref<8x32xf32, #tpu.memory_space<vmem>>, vector<1x32xf32>
    tpu.vector_store %arg6[%c4_58, %c0_59], %165 {strides = array<i32>} : memref<8x32xf32, #tpu.memory_space<vmem>>, vector<1x32xf32>,
    %167 = vector.extract_strided_slice %40 {offsets = [5, 0], sizes = [1, 384], strides = [1, 1]} : vector<8x384xf32> to vector<1x384xf32>
    %168 = arith.truncf %165 : vector<1x32xf32> to vector<1x32xbf16>
    %cst_60 = arith.constant dense<0.000000e+00> : vector<1x384xf32>
    %169 = tpu.matmul %168, %33, %cst_60 {dimension_numbers = #tpu.dot_dimension_numbers<[1], [0], [0], [1], [0, 0, 1, 1], [], []>} : vector<1x32xbf16>, vector<32x384xbf16>, vector<1x384xf32> -> vector<1x384xf32>
    %170 = arith.addf %169, %35 : vector<1x384xf32>
    %171 = vector.extract_strided_slice %167 {offsets = [0, 0], sizes = [1, 256], strides = [1, 1]} : vector<1x384xf32> to vector<1x256xf32>
    %172 = vector.extract_strided_slice %170 {offsets = [0, 0], sizes = [1, 256], strides = [1, 1]} : vector<1x384xf32> to vector<1x256xf32>
    %173 = arith.addf %171, %172 : vector<1x256xf32>
    %174 = arith.negf %173 : vector<1x256xf32>
    %175 = math.exp %174 : vector<1x256xf32>
    %cst_61 = arith.constant 1.000000e+00 : f32
    %176 = vector.broadcast %cst_61 : f32 to vector<1x256xf32>
    %177 = arith.addf %176, %175 : vector<1x256xf32>
    %178 = arith.divf %176, %177 : vector<1x256xf32>
    %179 = vector.extract_strided_slice %178 {offsets = [0, 0], sizes = [1, 32], strides = [1, 1]} : vector<1x256xf32> to vector<1x32xf32>
    %180 = vector.extract_strided_slice %178 {offsets = [0, 128], sizes = [1, 32], strides = [1, 1]} : vector<1x256xf32> to vector<1x32xf32>
    %181 = vector.extract_strided_slice %167 {offsets = [0, 256], sizes = [1, 32], strides = [1, 1]} : vector<1x384xf32> to vector<1x32xf32>
    %182 = vector.extract_strided_slice %170 {offsets = [0, 256], sizes = [1, 32], strides = [1, 1]} : vector<1x384xf32> to vector<1x32xf32>
    %183 = arith.mulf %179, %182 : vector<1x32xf32>
    %184 = arith.addf %181, %183 : vector<1x32xf32>
    %185 = math.tanh %184 : vector<1x32xf32>
    %cst_62 = arith.constant 1.000000e+00 : f32
    %186 = vector.broadcast %cst_62 : f32 to vector<1x32xf32>
    %187 = arith.subf %186, %180 : vector<1x32xf32>
    %188 = arith.mulf %187, %185 : vector<1x32xf32>
    %189 = arith.mulf %180, %165 : vector<1x32xf32>
    %190 = arith.addf %188, %189 : vector<1x32xf32>
    %c5_63 = arith.constant 5 : index
    %c0_64 = arith.constant 0 : index
    %191 = vector.load %arg6[%c5_63, %c0_64] : memref<8x32xf32, #tpu.memory_space<vmem>>, vector<1x32xf32>
    tpu.vector_store %arg6[%c5_63, %c0_64], %190 {strides = array<i32>} : memref<8x32xf32, #tpu.memory_space<vmem>>, vector<1x32xf32>,
    %192 = vector.extract_strided_slice %40 {offsets = [6, 0], sizes = [1, 384], strides = [1, 1]} : vector<8x384xf32> to vector<1x384xf32>
    %193 = arith.truncf %190 : vector<1x32xf32> to vector<1x32xbf16>
    %cst_65 = arith.constant dense<0.000000e+00> : vector<1x384xf32>
    %194 = tpu.matmul %193, %33, %cst_65 {dimension_numbers = #tpu.dot_dimension_numbers<[1], [0], [0], [1], [0, 0, 1, 1], [], []>} : vector<1x32xbf16>, vector<32x384xbf16>, vector<1x384xf32> -> vector<1x384xf32>
    %195 = arith.addf %194, %35 : vector<1x384xf32>
    %196 = vector.extract_strided_slice %192 {offsets = [0, 0], sizes = [1, 256], strides = [1, 1]} : vector<1x384xf32> to vector<1x256xf32>
    %197 = vector.extract_strided_slice %195 {offsets = [0, 0], sizes = [1, 256], strides = [1, 1]} : vector<1x384xf32> to vector<1x256xf32>
    %198 = arith.addf %196, %197 : vector<1x256xf32>
    %199 = arith.negf %198 : vector<1x256xf32>
    %200 = math.exp %199 : vector<1x256xf32>
    %cst_66 = arith.constant 1.000000e+00 : f32
    %201 = vector.broadcast %cst_66 : f32 to vector<1x256xf32>
    %202 = arith.addf %201, %200 : vector<1x256xf32>
    %203 = arith.divf %201, %202 : vector<1x256xf32>
    %204 = vector.extract_strided_slice %203 {offsets = [0, 0], sizes = [1, 32], strides = [1, 1]} : vector<1x256xf32> to vector<1x32xf32>
    %205 = vector.extract_strided_slice %203 {offsets = [0, 128], sizes = [1, 32], strides = [1, 1]} : vector<1x256xf32> to vector<1x32xf32>
    %206 = vector.extract_strided_slice %192 {offsets = [0, 256], sizes = [1, 32], strides = [1, 1]} : vector<1x384xf32> to vector<1x32xf32>
    %207 = vector.extract_strided_slice %195 {offsets = [0, 256], sizes = [1, 32], strides = [1, 1]} : vector<1x384xf32> to vector<1x32xf32>
    %208 = arith.mulf %204, %207 : vector<1x32xf32>
    %209 = arith.addf %206, %208 : vector<1x32xf32>
    %210 = math.tanh %209 : vector<1x32xf32>
    %cst_67 = arith.constant 1.000000e+00 : f32
    %211 = vector.broadcast %cst_67 : f32 to vector<1x32xf32>
    %212 = arith.subf %211, %205 : vector<1x32xf32>
    %213 = arith.mulf %212, %210 : vector<1x32xf32>
    %214 = arith.mulf %205, %190 : vector<1x32xf32>
    %215 = arith.addf %213, %214 : vector<1x32xf32>
    %c6_68 = arith.constant 6 : index
    %c0_69 = arith.constant 0 : index
    %216 = vector.load %arg6[%c6_68, %c0_69] : memref<8x32xf32, #tpu.memory_space<vmem>>, vector<1x32xf32>
    tpu.vector_store %arg6[%c6_68, %c0_69], %215 {strides = array<i32>} : memref<8x32xf32, #tpu.memory_space<vmem>>, vector<1x32xf32>,
    %217 = vector.extract_strided_slice %40 {offsets = [7, 0], sizes = [1, 384], strides = [1, 1]} : vector<8x384xf32> to vector<1x384xf32>
    %218 = arith.truncf %215 : vector<1x32xf32> to vector<1x32xbf16>
    %cst_70 = arith.constant dense<0.000000e+00> : vector<1x384xf32>
    %219 = tpu.matmul %218, %33, %cst_70 {dimension_numbers = #tpu.dot_dimension_numbers<[1], [0], [0], [1], [0, 0, 1, 1], [], []>} : vector<1x32xbf16>, vector<32x384xbf16>, vector<1x384xf32> -> vector<1x384xf32>
    %220 = arith.addf %219, %35 : vector<1x384xf32>
    %221 = vector.extract_strided_slice %217 {offsets = [0, 0], sizes = [1, 256], strides = [1, 1]} : vector<1x384xf32> to vector<1x256xf32>
    %222 = vector.extract_strided_slice %220 {offsets = [0, 0], sizes = [1, 256], strides = [1, 1]} : vector<1x384xf32> to vector<1x256xf32>
    %223 = arith.addf %221, %222 : vector<1x256xf32>
    %224 = arith.negf %223 : vector<1x256xf32>
    %225 = math.exp %224 : vector<1x256xf32>
    %cst_71 = arith.constant 1.000000e+00 : f32
    %226 = vector.broadcast %cst_71 : f32 to vector<1x256xf32>
    %227 = arith.addf %226, %225 : vector<1x256xf32>
    %228 = arith.divf %226, %227 : vector<1x256xf32>
    %229 = vector.extract_strided_slice %228 {offsets = [0, 0], sizes = [1, 32], strides = [1, 1]} : vector<1x256xf32> to vector<1x32xf32>
    %230 = vector.extract_strided_slice %228 {offsets = [0, 128], sizes = [1, 32], strides = [1, 1]} : vector<1x256xf32> to vector<1x32xf32>
    %231 = vector.extract_strided_slice %217 {offsets = [0, 256], sizes = [1, 32], strides = [1, 1]} : vector<1x384xf32> to vector<1x32xf32>
    %232 = vector.extract_strided_slice %220 {offsets = [0, 256], sizes = [1, 32], strides = [1, 1]} : vector<1x384xf32> to vector<1x32xf32>
    %233 = arith.mulf %229, %232 : vector<1x32xf32>
    %234 = arith.addf %231, %233 : vector<1x32xf32>
    %235 = math.tanh %234 : vector<1x32xf32>
    %cst_72 = arith.constant 1.000000e+00 : f32
    %236 = vector.broadcast %cst_72 : f32 to vector<1x32xf32>
    %237 = arith.subf %236, %230 : vector<1x32xf32>
    %238 = arith.mulf %237, %235 : vector<1x32xf32>
    %239 = arith.mulf %230, %215 : vector<1x32xf32>
    %240 = arith.addf %238, %239 : vector<1x32xf32>
    %c7_73 = arith.constant 7 : index
    %c0_74 = arith.constant 0 : index
    %241 = vector.load %arg6[%c7_73, %c0_74] : memref<8x32xf32, #tpu.memory_space<vmem>>, vector<1x32xf32>
    tpu.vector_store %arg6[%c7_73, %c0_74], %240 {strides = array<i32>} : memref<8x32xf32, #tpu.memory_space<vmem>>, vector<1x32xf32>,
    %c0_75 = arith.constant 0 : index
    %c0_76 = arith.constant 0 : index
    %242 = vector.load %arg7[%c0_75, %c0_76] : memref<1x32xf32, #tpu.memory_space<vmem>>, vector<1x32xf32>
    tpu.vector_store %arg7[%c0_75, %c0_76], %240 {strides = array<i32>} : memref<1x32xf32, #tpu.memory_space<vmem>>, vector<1x32xf32>,
    return
  }
  func.func @transform_0(%arg0: i32, %arg1: memref<8xi32, #tpu.memory_space<smem>>) -> (i32, i32) {
    %c0_i32 = arith.constant 0 : i32
    %c0_i32_0 = arith.constant 0 : i32
    %c0_i32_1 = arith.constant 0 : i32
    return %c0_i32, %c0_i32_0 : i32, i32
  }
  func.func @transform_1(%arg0: i32, %arg1: memref<8xi32, #tpu.memory_space<smem>>) -> (i32, i32) {
    %c0_i32 = arith.constant 0 : i32
    %c0_i32_0 = arith.constant 0 : i32
    %c0_i32_1 = arith.constant 0 : i32
    return %c0_i32, %c0_i32_0 : i32, i32
  }
  func.func @transform_2(%arg0: i32, %arg1: memref<8xi32, #tpu.memory_space<smem>>) -> (i32, i32) {
    %c0_i32 = arith.constant 0 : i32
    %c0_i32_0 = arith.constant 0 : i32
    %c0_i32_1 = arith.constant 0 : i32
    return %c0_i32, %c0_i32_0 : i32, i32
  }
  func.func @transform_3(%arg0: i32, %arg1: memref<8xi32, #tpu.memory_space<smem>>) -> (i32, i32) {
    %c0_i32 = arith.constant 0 : i32
    %c0_i32_0 = arith.constant 0 : i32
    %c0_i32_1 = arith.constant 0 : i32
    return %c0_i32, %c0_i32_0 : i32, i32
  }
  func.func @transform_4(%arg0: i32, %arg1: memref<8xi32, #tpu.memory_space<smem>>) -> (i32, i32) {
    %c0_i32 = arith.constant 0 : i32
    %c0_i32_0 = arith.constant 0 : i32
    %c0_i32_1 = arith.constant 0 : i32
    return %c0_i32, %c0_i32_0 : i32, i32
  }
  func.func @transform_5(%arg0: i32, %arg1: memref<8xi32, #tpu.memory_space<smem>>) -> (i32, i32) {
    %c0_i32 = arith.constant 0 : i32
    %c0_i32_0 = arith.constant 0 : i32
    %c0_i32_1 = arith.constant 0 : i32
    return %c0_i32, %c0_i32_0 : i32, i32
  }
}

</mosaic_0001>

<llo_original>
// kernel: encoder_rnn_forward.1
$region0: #{encoder_rnn_forward.1}
  #allocation0 [shape = 'u32[]', space=smem, size = 0x4, offset = 0x4, fixed_abs, tag = 'smem constant byte address 0x4 - core index']
  #allocation1 [shape = 'u32[144,128]{1,0:T(1,128)}', space=vmem, size = 0x12000, scoped, tag = 'internal scratch']
  #allocation2 [shape = 'f32[8,32]{1,0:T(8,128)}', space=vmem, size = 0x1000, scoped, tag = 'scratch operand']
  #allocation3 [shape = 's32[1]{0}', space=sflag, size = 0x4, scoped, tag = 'scoped memory for encoder_rnn_forward.1']
  #allocation4 [shape = 'u8[512]{0}', space=smem, size = 0x200, scoped, tag = 'prefetched SMEM operand 0']
  %s0 = inlined_call_operand.vmem [shape: s32[8], index: 0, kind: input, shape index: {}]
  %s1 = inlined_call_operand.vmem [shape: f32[64,32], index: 1, kind: input, shape index: {}]
  %s2 = inlined_call_operand.vmem [shape: f32[1,32], index: 2, kind: input, shape index: {}]
  %s3 = inlined_call_operand.vmem [shape: bf16[64,384], index: 3, kind: input, shape index: {}]
  %s4 = inlined_call_operand.vmem [shape: f32[2,384], index: 4, kind: input, shape index: {}]
  %s5 = inlined_call_operand.hbm [shape: f32[8,32], index: 5, kind: output, shape index: {0}]
  %s6 = inlined_call_operand.hbm [shape: f32[1,32], index: 6, kind: output, shape index: {1}]
  %7 = xla_tuple %s5, %s6
  %s8 = sld [smem:[#allocation0]]
  $region34: #{encoder_rnn_forward.1} parent=0
    _
  %s10 = ssub.s32 1, %s8
  %s11 = scalar_select 0, %s10, %s8
  %s12 = sshll.u32 %s0, 4
  %s13 = int_to_ptr.vmem [resolvable:$true] %s12
  %15 = dma.vmem_to_smem %s13, 16, [#allocation4], [#allocation3]
  %16 = dma.done [#allocation3], 16
  %17 = sfence
  $region1: #{encoder_rnn_forward.1} parent=0
    #allocation5 [shape = 'u8[4096]{0}', space=vmem, size = 0x1000, scoped, tag = 'output window, operand 0, single buffered']
    #allocation6 [shape = 's32[1]{0}', space=sflag, size = 0x4, scoped, tag = 'scoped memory for encoder_rnn_forward.1']
    #allocation7 [shape = 'u8[512]{0}', space=vmem, size = 0x400, scoped, tag = 'output window, operand 1, single buffered']
    #allocation8 [shape = 's32[1]{0}', space=sflag, size = 0x4, scoped, tag = 'scoped memory for encoder_rnn_forward.1']
    %18 = vsyncpa [#allocation6], 0
    %19 = vsyncpa [#allocation8], 0
    // Predicated region
    $region2: #{encoder_rnn_forward.1} parent=1 // pred_check
      _
    $region3: #{encoder_rnn_forward.1} parent=1 // pred_check_branch
      %21 = sbr.rel (0) target = $region5
    $region4: #{encoder_rnn_forward.1} parent=1 // pred_region
      _
    $region5: #{encoder_rnn_forward.1} parent=1 // pred_fallthru
      _
    // Predicated region
    $region6: #{encoder_rnn_forward.1} parent=1 // pred_check
      _
    $region7: #{encoder_rnn_forward.1} parent=1 // pred_check_branch
      %23 = sbr.rel (0) target = $region9
    $region8: #{encoder_rnn_forward.1} parent=1 // pred_region
      _
    $region9: #{encoder_rnn_forward.1} parent=1 // pred_fallthru
      _
    // Predicated region
    $region10: #{encoder_rnn_forward.1} parent=1 // pred_check
      _
    $region11: #{encoder_rnn_forward.1} parent=1 // pred_check_branch
      %25 = sbr.rel (0) target = $region13
    $region12: #{encoder_rnn_forward.1} parent=1 // pred_region
      _
    $region13: #{encoder_rnn_forward.1} parent=1 // pred_fallthru
      _
    // Predicated region
    $region14: #{encoder_rnn_forward.1} parent=1 // pred_check
      _
    $region15: #{encoder_rnn_forward.1} parent=1 // pred_check_branch
      %27 = sbr.rel (0) target = $region17
    $region16: #{encoder_rnn_forward.1} parent=1 // pred_region
      _
    $region17: #{encoder_rnn_forward.1} parent=1 // pred_fallthru
      _
    %s29 = sld [smem:[#allocation4]]
    %s30 = scalar_lea.vmem %s1, %s29
    %v31 = vld [vmem:[%s30] sm:$0x1]
    %vm32 = vcmask 253952
    %33 = vst.msk [vmem:[#allocation2] sm:$0x1] %vm32, %v31
    %s34 = sld [smem:[#allocation4 + $0x1]]
    %s35 = scalar_lea.vmem %s1, %s34
    %v36 = vld [vmem:[%s35] sm:$0x1]
    %37 = vst.msk [vmem:[#allocation2 + $0x1] sm:$0x1] %vm32, %v36
    %s38 = sld [smem:[#allocation4 + $0x2]]
    %s39 = scalar_lea.vmem %s1, %s38
    %v40 = vld [vmem:[%s39] sm:$0x1]
    %41 = vst.msk [vmem:[#allocation2 + $0x2] sm:$0x1] %vm32, %v40
    %s42 = sld [smem:[#allocation4 + $0x3]]
    %s43 = scalar_lea.vmem %s1, %s42
    %v44 = vld [vmem:[%s43] sm:$0x1]
    %45 = vst.msk [vmem:[#allocation2 + $0x3] sm:$0x1] %vm32, %v44
    %s46 = sld [smem:[#allocation4 + $0x4]]
    %s47 = scalar_lea.vmem %s1, %s46
    %v48 = vld [vmem:[%s47] sm:$0x1]
    %49 = vst.msk [vmem:[#allocation2 + $0x4] sm:$0x1] %vm32, %v48
    %s50 = sld [smem:[#allocation4 + $0x5]]
    %s51 = scalar_lea.vmem %s1, %s50
    %v52 = vld [vmem:[%s51] sm:$0x1]
    %53 = vst.msk [vmem:[#allocation2 + $0x5] sm:$0x1] %vm32, %v52
    %s54 = sld [smem:[#allocation4 + $0x6]]
    %s55 = scalar_lea.vmem %s1, %s54
    %v56 = vld [vmem:[%s55] sm:$0x1]
    %57 = vst.msk [vmem:[#allocation2 + $0x6] sm:$0x1] %vm32, %v56
    %s58 = sld [smem:[#allocation4 + $0x7]]
    %s59 = scalar_lea.vmem %s1, %s58
    %v60 = vld [vmem:[%s59] sm:$0x1]
    %61 = vst.msk [vmem:[#allocation2 + $0x7] sm:$0x1] %vm32, %v60
    %v62 = vld [vmem:[%s3] sm:$0xff]
    %v63 = vld [vmem:[%s3 + $0x8] sm:$0xf]
    %v64 = vld [vmem:[%s3 + $0xc] sm:$0xff]
    %v65 = vld [vmem:[%s3 + $0x14] sm:$0xf]
    %v66 = vld [vmem:[%s3 + $0x18] sm:$0xff]
    %v67 = vld [vmem:[%s3 + $0x20] sm:$0xf]
    %v68 = vld [vmem:[%s3 + $0x24] sm:$0xff]
    %v69 = vld [vmem:[%s3 + $0x2c] sm:$0xf]
    %v70 = vld [vmem:[%s3 + $0x30] sm:$0xff]
    %v71 = vld [vmem:[%s3 + $0x38] sm:$0xf]
    %v72 = vld [vmem:[%s3 + $0x3c] sm:$0xff]
    %v73 = vld [vmem:[%s3 + $0x44] sm:$0xf]
    %v74 = vld [vmem:[%s3 + $0x48] sm:$0xff]
    %v75 = vld [vmem:[%s3 + $0x50] sm:$0xf]
    %v76 = vld [vmem:[%s3 + $0x54] sm:$0xff]
    %v77 = vld [vmem:[%s3 + $0x5c] sm:$0xf]
    %v78 = vld [vmem:[%s4] ss:$2 sm:$0x7]
    %s79 = scalar_lea.vmem %s4, 1
    %v80 = vld [vmem:[%s79] ss:$2 sm:$0x7]
    %v81 = vld [vmem:[#allocation2] sm:$0xff]
    %v82 = vpack.c.bf16 %v81, %v81
    %v84 = vlaneseq
    %v85 = vshrl.u32 %v84, 7
    %v86 = vsub.s32 0, %v85
    %v87 = vrot.slane %v78, %v86
    %v88 = vlaneseq
    %v89 = vshrl.u32 %v88, 7
    %v90 = vsub.s32 1, %v89
    %v91 = vrot.slane %v78, %v90
    %v92 = vlaneseq
    %v93 = vshrl.u32 %v92, 7
    %v94 = vsub.s32 2, %v93
    %v95 = vrot.slane %v78, %v94
    %v107 = vunpack.c.l.b16 %v62
    %v108 = vunpack.c.h.b16 %v62
    %v109 = vunpack.c.l.b16 %v63
    %v110 = vunpack.c.l.b16 %v64
    %v111 = vunpack.c.h.b16 %v64
    %v112 = vunpack.c.l.b16 %v65
    %v113 = vunpack.c.l.b16 %v66
    %v114 = vunpack.c.h.b16 %v66
    %v115 = vunpack.c.l.b16 %v67
    %v116 = vunpack.c.l.b16 %v68
    %v117 = vunpack.c.h.b16 %v68
    %v118 = vunpack.c.l.b16 %v69
    %v119 = vpack.c.b16 %v110, %v107
    %v120 = vpack.c.b16 %v111, %v108
    %v121 = vpack.c.b16 %v112, %v109
    %v122 = vpack.c.b16 %v116, %v113
    %v123 = vpack.c.b16 %v117, %v114
    %v124 = vpack.c.b16 %v118, %v115
    %vm131 = vcmask 261120
    %v133 = vsel %vm131, %v82, 0
    %135 = vmatprep.subr.bf16.mxu0 %v120
    %136 = vmatpush1.bf16.msra.mxu0 %v119
    %137 = vmatprep.subr.bf16.mxu0 %v123
    %138 = vmatpush1.bf16.msra.mxu0 %v122
    %139 = vmatprep.subr.bf16.mxu0 0
    %140 = vmatpush1.bf16.msra.mxu0 0
    %141 = vmatprep.subr.bf16.mxu0 0
    %142 = vmatpush1.bf16.msra.mxu0 0
    %143 = vmatprep.subr.bf16.mxu0 0
    %144 = vmatpush1.bf16.msra.mxu0 0
    %145 = vmatprep.subr.bf16.mxu0 0
    %146 = vmatpush1.bf16.msra.mxu0 0
    %147 = vmatprep.subr.bf16.mxu0 0
    %148 = vmatpush1.bf16.msra.mxu0 0
    %149 = vmatprep.subr.bf16.mxu0 0
    %150 = vmatpush1.bf16.msra.mxu0 0
    %151 = vmatprep.subr.bf16.mxu0 0
    %152 = vmatpush1.bf16.msra.mxu0 0
    %153 = vmatprep.subr.bf16.mxu0 0
    %154 = vmatpush1.bf16.msra.mxu0 0
    %155 = vmatprep.subr.bf16.mxu0 0
    %156 = vmatpush1.bf16.msra.mxu0 0
    %157 = vmatprep.subr.bf16.mxu0 0
    %158 = vmatpush1.bf16.msra.mxu0 0
    %159 = vmatprep.subr.bf16.mxu0 0
    %160 = vmatpush1.bf16.msra.mxu0 0
    %161 = vmatprep.subr.bf16.mxu0 0
    %162 = vmatpush1.bf16.msra.mxu0 0
    %163 = vmatprep.subr.bf16.mxu0 0
    %164 = vmatpush1.bf16.msra.mxu0 0
    %165 = vmatprep.subr.bf16.mxu0 0
    %166 = vmatpush1.bf16.msra.mxu0 0
    %167 = vmatprep.mubr.bf16.mxu0 0
    %168 = vmatmul.mubr.bf16.gmra.mrb[0].mxu0 %v133
    %v169 = vpop.f32.mrb[0].mxu0
    %v170 = vadd.f32 %v87, %v169
    %v171 = vpop.f32.mrb[0].mxu0
    %v172 = vadd.f32 %v91, %v171
    %v173 = vpop.f32.mrb[0].mxu0
    %v174 = vpop.f32.mrb[0].mxu0
    %175 = vdwg.mxu0
    %176 = vmatprep.subr.bf16.mxu0 0
    %177 = vmatpush1.bf16.msra.mxu0 %v121
    %178 = vmatprep.subr.bf16.mxu0 0
    %179 = vmatpush1.bf16.msra.mxu0 %v124
    %180 = vmatprep.subr.bf16.mxu0 0
    %181 = vmatpush1.bf16.msra.mxu0 0
    %182 = vmatprep.subr.bf16.mxu0 0
    %183 = vmatpush1.bf16.msra.mxu0 0
    %184 = vmatprep.subr.bf16.mxu0 0
    %185 = vmatpush1.bf16.msra.mxu0 0
    %186 = vmatprep.subr.bf16.mxu0 0
    %187 = vmatpush1.bf16.msra.mxu0 0
    %188 = vmatprep.subr.bf16.mxu0 0
    %189 = vmatpush1.bf16.msra.mxu0 0
    %190 = vmatprep.subr.bf16.mxu0 0
    %191 = vmatpush1.bf16.msra.mxu0 0
    %192 = vmatprep.subr.bf16.mxu0 0
    %193 = vmatpush1.bf16.msra.mxu0 0
    %194 = vmatprep.subr.bf16.mxu0 0
    %195 = vmatpush1.bf16.msra.mxu0 0
    %196 = vmatprep.subr.bf16.mxu0 0
    %197 = vmatpush1.bf16.msra.mxu0 0
    %198 = vmatprep.subr.bf16.mxu0 0
    %199 = vmatpush1.bf16.msra.mxu0 0
    %200 = vmatprep.subr.bf16.mxu0 0
    %201 = vmatpush1.bf16.msra.mxu0 0
    %202 = vmatprep.subr.bf16.mxu0 0
    %203 = vmatpush1.bf16.msra.mxu0 0
    %204 = vmatprep.subr.bf16.mxu0 0
    %205 = vmatpush1.bf16.msra.mxu0 0
    %206 = vmatprep.subr.bf16.mxu0 0
    %207 = vmatpush1.bf16.msra.mxu0 0
    %208 = vmatprep.mubr.bf16.mxu0 0
    %209 = vmatmul.mubr.bf16.gmra.mrb[0].mxu0 %v133
    %v210 = vpop.f32.mrb[0].mxu0
    %v211 = vadd.f32 %v95, %v210
    %v212 = vpop.f32.mrb[0].mxu0
    %v213 = vpop.f32.mrb[0].mxu0
    %v214 = vpop.f32.mrb[0].mxu0
    %215 = vdwg.mxu0
    %v216 = vld [vmem:[%s2] sm:$0x1]
    %v217 = vpack.c.bf16 %v216, %v216
    %v226 = vunpack.c.l.b16 %v70
    %v227 = vunpack.c.h.b16 %v70
    %v228 = vunpack.c.l.b16 %v71
    %v229 = vunpack.c.l.b16 %v72
    %v230 = vunpack.c.h.b16 %v72
    %v231 = vunpack.c.l.b16 %v73
    %v232 = vunpack.c.l.b16 %v74
    %v233 = vunpack.c.h.b16 %v74
    %v234 = vunpack.c.l.b16 %v75
    %v235 = vunpack.c.l.b16 %v76
    %v236 = vunpack.c.h.b16 %v76
    %v237 = vunpack.c.l.b16 %v77
    %v238 = vpack.c.b16 %v229, %v226
    %v239 = vpack.c.b16 %v230, %v227
    %v240 = vpack.c.b16 %v231, %v228
    %v241 = vpack.c.b16 %v235, %v232
    %v242 = vpack.c.b16 %v236, %v233
    %v243 = vpack.c.b16 %v237, %v234
    %v251 = vlaneseq
    %v252 = vshrl.u32 %v251, 7
    %v253 = vsub.s32 0, %v252
    %v254 = vrot.slane %v80, %v253
    %v255 = vlaneseq
    %v256 = vshrl.u32 %v255, 7
    %v257 = vsub.s32 1, %v256
    %v258 = vrot.slane %v80, %v257
    %v259 = vlaneseq
    %v260 = vshrl.u32 %v259, 7
    %v261 = vsub.s32 2, %v260
    %v262 = vrot.slane %v80, %v261
    %v267 = vsel %vm131, %v217, 0
    %269 = vmatprep.subr.bf16.mxu0 %v239
    %270 = vmatpush1.bf16.msra.mxu0 %v238
    %271 = vmatprep.subr.bf16.mxu0 %v242
    %272 = vmatpush1.bf16.msra.mxu0 %v241
    %273 = vmatprep.subr.bf16.mxu0 0
    %274 = vmatpush1.bf16.msra.mxu0 0
    %275 = vmatprep.subr.bf16.mxu0 0
    %276 = vmatpush1.bf16.msra.mxu0 0
    %277 = vmatprep.subr.bf16.mxu0 0
    %278 = vmatpush1.bf16.msra.mxu0 0
    %279 = vmatprep.subr.bf16.mxu0 0
    %280 = vmatpush1.bf16.msra.mxu0 0
    %281 = vmatprep.subr.bf16.mxu0 0
    %282 = vmatpush1.bf16.msra.mxu0 0
    %283 = vmatprep.subr.bf16.mxu0 0
    %284 = vmatpush1.bf16.msra.mxu0 0
    %285 = vmatprep.subr.bf16.mxu0 0
    %286 = vmatpush1.bf16.msra.mxu0 0
    %287 = vmatprep.subr.bf16.mxu0 0
    %288 = vmatpush1.bf16.msra.mxu0 0
    %289 = vmatprep.subr.bf16.mxu0 0
    %290 = vmatpush1.bf16.msra.mxu0 0
    %291 = vmatprep.subr.bf16.mxu0 0
    %292 = vmatpush1.bf16.msra.mxu0 0
    %293 = vmatprep.subr.bf16.mxu0 0
    %294 = vmatpush1.bf16.msra.mxu0 0
    %295 = vmatprep.subr.bf16.mxu0 0
    %296 = vmatpush1.bf16.msra.mxu0 0
    %297 = vmatprep.subr.bf16.mxu0 0
    %298 = vmatpush1.bf16.msra.mxu0 0
    %299 = vmatprep.subr.bf16.mxu0 0
    %300 = vmatpush1.bf16.msra.mxu0 0
    %301 = vmatprep.mubr.bf16.mxu0 0
    %302 = vmatmul.mubr.bf16.gmra.mrb[0].mxu0 %v267
    %v303 = vpop.f32.mrb[0].mxu0
    %v304 = vadd.f32 %v254, %v303
    %v305 = vpop.f32.mrb[0].mxu0
    %v306 = vadd.f32 %v258, %v305
    %v307 = vpop.f32.mrb[0].mxu0
    %v308 = vpop.f32.mrb[0].mxu0
    %309 = vdwg.mxu0
    %310 = vmatprep.subr.bf16.mxu0 0
    %311 = vmatpush1.bf16.msra.mxu0 %v240
    %312 = vmatprep.subr.bf16.mxu0 0
    %313 = vmatpush1.bf16.msra.mxu0 %v243
    %314 = vmatprep.subr.bf16.mxu0 0
    %315 = vmatpush1.bf16.msra.mxu0 0
    %316 = vmatprep.subr.bf16.mxu0 0
    %317 = vmatpush1.bf16.msra.mxu0 0
    %318 = vmatprep.subr.bf16.mxu0 0
    %319 = vmatpush1.bf16.msra.mxu0 0
    %320 = vmatprep.subr.bf16.mxu0 0
    %321 = vmatpush1.bf16.msra.mxu0 0
    %322 = vmatprep.subr.bf16.mxu0 0
    %323 = vmatpush1.bf16.msra.mxu0 0
    %324 = vmatprep.subr.bf16.mxu0 0
    %325 = vmatpush1.bf16.msra.mxu0 0
    %326 = vmatprep.subr.bf16.mxu0 0
    %327 = vmatpush1.bf16.msra.mxu0 0
    %328 = vmatprep.subr.bf16.mxu0 0
    %329 = vmatpush1.bf16.msra.mxu0 0
    %330 = vmatprep.subr.bf16.mxu0 0
    %331 = vmatpush1.bf16.msra.mxu0 0
    %332 = vmatprep.subr.bf16.mxu0 0
    %333 = vmatpush1.bf16.msra.mxu0 0
    %334 = vmatprep.subr.bf16.mxu0 0
    %335 = vmatpush1.bf16.msra.mxu0 0
    %336 = vmatprep.subr.bf16.mxu0 0
    %337 = vmatpush1.bf16.msra.mxu0 0
    %338 = vmatprep.subr.bf16.mxu0 0
    %339 = vmatpush1.bf16.msra.mxu0 0
    %340 = vmatprep.subr.bf16.mxu0 0
    %341 = vmatpush1.bf16.msra.mxu0 0
    %342 = vmatprep.mubr.bf16.mxu0 0
    %343 = vmatmul.mubr.bf16.gmra.mrb[0].mxu0 %v267
    %v344 = vpop.f32.mrb[0].mxu0
    %v345 = vadd.f32 %v262, %v344
    %v346 = vpop.f32.mrb[0].mxu0
    %v347 = vpop.f32.mrb[0].mxu0
    %v348 = vpop.f32.mrb[0].mxu0
    %349 = vdwg.mxu0
    %v350 = vadd.f32 %v170, %v304
    %v351 = vadd.f32 %v172, %v306
    %v352 = vxor.u32 %v350, 2147483648
    %v353 = vxor.u32 %v351, 2147483648
    %v354 = vmul.f32 %v352, 1.442695
    %v355 = vpow.pop %v354
    %v356 = vmul.f32 %v353, 1.442695
    %v357 = vpow.pop %v356
    %v358 = vadd.f32 %v355, 1.0
    %v359 = vadd.f32 %v357, 1.0
    %v360 = vrcp.pop %v358
    %v361 = vmul.f32 1.0, %v360
    %v362 = vrcp.pop %v359
    %v363 = vmul.f32 1.0, %v362
    %v364 = vmul.f32 %v361, %v345
    %v365 = vadd.f32 %v211, %v364
    %v366 = vtanh.pop %v365
    %v367 = vsub.f32 1.0, %v363
    %v368 = vmul.f32 %v367, %v366
    %v369 = vmul.f32 %v363, %v216
    %v370 = vadd.f32 %v368, %v369
    %371 = vst.msk [vmem:[#allocation5] sm:$0x1] %vm32, %v370
    %v372 = vpack.c.bf16 %v370, %v370
    %v374 = vsel %vm131, %v372, 0
    %376 = vmatprep.subr.bf16.mxu0 %v239
    %377 = vmatpush1.bf16.msra.mxu0 %v238
    %378 = vmatprep.subr.bf16.mxu0 %v242
    %379 = vmatpush1.bf16.msra.mxu0 %v241
    %380 = vmatprep.subr.bf16.mxu0 0
    %381 = vmatpush1.bf16.msra.mxu0 0
    %382 = vmatprep.subr.bf16.mxu0 0
    %383 = vmatpush1.bf16.msra.mxu0 0
    %384 = vmatprep.subr.bf16.mxu0 0
    %385 = vmatpush1.bf16.msra.mxu0 0
    %386 = vmatprep.subr.bf16.mxu0 0
    %387 = vmatpush1.bf16.msra.mxu0 0
    %388 = vmatprep.subr.bf16.mxu0 0
    %389 = vmatpush1.bf16.msra.mxu0 0
    %390 = vmatprep.subr.bf16.mxu0 0
    %391 = vmatpush1.bf16.msra.mxu0 0
    %392 = vmatprep.subr.bf16.mxu0 0
    %393 = vmatpush1.bf16.msra.mxu0 0
    %394 = vmatprep.subr.bf16.mxu0 0
    %395 = vmatpush1.bf16.msra.mxu0 0
    %396 = vmatprep.subr.bf16.mxu0 0
    %397 = vmatpush1.bf16.msra.mxu0 0
    %398 = vmatprep.subr.bf16.mxu0 0
    %399 = vmatpush1.bf16.msra.mxu0 0
    %400 = vmatprep.subr.bf16.mxu0 0
    %401 = vmatpush1.bf16.msra.mxu0 0
    %402 = vmatprep.subr.bf16.mxu0 0
    %403 = vmatpush1.bf16.msra.mxu0 0
    %404 = vmatprep.subr.bf16.mxu0 0
    %405 = vmatpush1.bf16.msra.mxu0 0
    %406 = vmatprep.subr.bf16.mxu0 0
    %407 = vmatpush1.bf16.msra.mxu0 0
    %408 = vmatprep.mubr.bf16.mxu0 0
    %409 = vmatmul.mubr.bf16.gmra.mrb[0].mxu0 %v374
    %v410 = vpop.f32.mrb[0].mxu0
    %v411 = vadd.f32 %v254, %v410
    %v412 = vpop.f32.mrb[0].mxu0
    %v413 = vadd.f32 %v258, %v412
    %v414 = vpop.f32.mrb[0].mxu0
    %v415 = vpop.f32.mrb[0].mxu0
    %416 = vdwg.mxu0
    %417 = vmatprep.subr.bf16.mxu0 0
    %418 = vmatpush1.bf16.msra.mxu0 %v240
    %419 = vmatprep.subr.bf16.mxu0 0
    %420 = vmatpush1.bf16.msra.mxu0 %v243
    %421 = vmatprep.subr.bf16.mxu0 0
    %422 = vmatpush1.bf16.msra.mxu0 0
    %423 = vmatprep.subr.bf16.mxu0 0
    %424 = vmatpush1.bf16.msra.mxu0 0
    %425 = vmatprep.subr.bf16.mxu0 0
    %426 = vmatpush1.bf16.msra.mxu0 0
    %427 = vmatprep.subr.bf16.mxu0 0
    %428 = vmatpush1.bf16.msra.mxu0 0
    %429 = vmatprep.subr.bf16.mxu0 0
    %430 = vmatpush1.bf16.msra.mxu0 0
    %431 = vmatprep.subr.bf16.mxu0 0
    %432 = vmatpush1.bf16.msra.mxu0 0
    %433 = vmatprep.subr.bf16.mxu0 0
    %434 = vmatpush1.bf16.msra.mxu0 0
    %435 = vmatprep.subr.bf16.mxu0 0
    %436 = vmatpush1.bf16.msra.mxu0 0
    %437 = vmatprep.subr.bf16.mxu0 0
    %438 = vmatpush1.bf16.msra.mxu0 0
    %439 = vmatprep.subr.bf16.mxu0 0
    %440 = vmatpush1.bf16.msra.mxu0 0
    %441 = vmatprep.subr.bf16.mxu0 0
    %442 = vmatpush1.bf16.msra.mxu0 0
    %443 = vmatprep.subr.bf16.mxu0 0
    %444 = vmatpush1.bf16.msra.mxu0 0
    %445 = vmatprep.subr.bf16.mxu0 0
    %446 = vmatpush1.bf16.msra.mxu0 0
    %447 = vmatprep.subr.bf16.mxu0 0
    %448 = vmatpush1.bf16.msra.mxu0 0
    %449 = vmatprep.mubr.bf16.mxu0 0
    %450 = vmatmul.mubr.bf16.gmra.mrb[0].mxu0 %v374
    %v451 = vpop.f32.mrb[0].mxu0
    %v452 = vadd.f32 %v262, %v451
    %v453 = vpop.f32.mrb[0].mxu0
    %v454 = vpop.f32.mrb[0].mxu0
    %v455 = vpop.f32.mrb[0].mxu0
    %456 = vdwg.mxu0
    %v459 = vrot.slane %v411, 7
    %v460 = vrot.slane %v413, 7
    %v463 = vadd.f32 %v170, %v459
    %v464 = vadd.f32 %v172, %v460
    %v465 = vxor.u32 %v463, 2147483648
    %v466 = vxor.u32 %v464, 2147483648
    %v467 = vmul.f32 %v465, 1.442695
    %v468 = vpow.pop %v467
    %v469 = vmul.f32 %v466, 1.442695
    %v470 = vpow.pop %v469
    %v471 = vadd.f32 %v468, 1.0
    %v472 = vadd.f32 %v470, 1.0
    %v473 = vrcp.pop %v471
    %v474 = vmul.f32 1.0, %v473
    %v475 = vrcp.pop %v472
    %v476 = vmul.f32 1.0, %v475
    %v478 = vrot.slane %v452, 7
    %v480 = vmul.f32 %v474, %v478
    %v481 = vadd.f32 %v211, %v480
    %v482 = vtanh.pop %v481
    %v483 = vsub.f32 1.0, %v476
    %v484 = vmul.f32 %v483, %v482
    %v486 = vrot.slane %v370, 7
    %v488 = vmul.f32 %v476, %v486
    %v489 = vadd.f32 %v484, %v488
    %vm490 = vcmask 254977
    %491 = vst.msk [vmem:[#allocation5] sm:$0x2] %vm490, %v489
    %v492 = vpack.c.bf16 %v489, %v489
    %v494 = vshrl.u32 %v492, 16
    %v497 = vsel %vm131, %v494, 0
    %499 = vmatprep.subr.bf16.mxu0 %v239
    %500 = vmatpush1.bf16.msra.mxu0 %v238
    %501 = vmatprep.subr.bf16.mxu0 %v242
    %502 = vmatpush1.bf16.msra.mxu0 %v241
    %503 = vmatprep.subr.bf16.mxu0 0
    %504 = vmatpush1.bf16.msra.mxu0 0
    %505 = vmatprep.subr.bf16.mxu0 0
    %506 = vmatpush1.bf16.msra.mxu0 0
    %507 = vmatprep.subr.bf16.mxu0 0
    %508 = vmatpush1.bf16.msra.mxu0 0
    %509 = vmatprep.subr.bf16.mxu0 0
    %510 = vmatpush1.bf16.msra.mxu0 0
    %511 = vmatprep.subr.bf16.mxu0 0
    %512 = vmatpush1.bf16.msra.mxu0 0
    %513 = vmatprep.subr.bf16.mxu0 0
    %514 = vmatpush1.bf16.msra.mxu0 0
    %515 = vmatprep.subr.bf16.mxu0 0
    %516 = vmatpush1.bf16.msra.mxu0 0
    %517 = vmatprep.subr.bf16.mxu0 0
    %518 = vmatpush1.bf16.msra.mxu0 0
    %519 = vmatprep.subr.bf16.mxu0 0
    %520 = vmatpush1.bf16.msra.mxu0 0
    %521 = vmatprep.subr.bf16.mxu0 0
    %522 = vmatpush1.bf16.msra.mxu0 0
    %523 = vmatprep.subr.bf16.mxu0 0
    %524 = vmatpush1.bf16.msra.mxu0 0
    %525 = vmatprep.subr.bf16.mxu0 0
    %526 = vmatpush1.bf16.msra.mxu0 0
    %527 = vmatprep.subr.bf16.mxu0 0
    %528 = vmatpush1.bf16.msra.mxu0 0
    %529 = vmatprep.subr.bf16.mxu0 0
    %530 = vmatpush1.bf16.msra.mxu0 0
    %531 = vmatprep.mubr.bf16.mxu0 0
    %532 = vmatmul.mubr.bf16.gmra.mrb[0].mxu0 %v497
    %v533 = vpop.f32.mrb[0].mxu0
    %v534 = vadd.f32 %v254, %v533
    %v535 = vpop.f32.mrb[0].mxu0
    %v536 = vadd.f32 %v258, %v535
    %v537 = vpop.f32.mrb[0].mxu0
    %v538 = vpop.f32.mrb[0].mxu0
    %539 = vdwg.mxu0
    %540 = vmatprep.subr.bf16.mxu0 0
    %541 = vmatpush1.bf16.msra.mxu0 %v240
    %542 = vmatprep.subr.bf16.mxu0 0
    %543 = vmatpush1.bf16.msra.mxu0 %v243
    %544 = vmatprep.subr.bf16.mxu0 0
    %545 = vmatpush1.bf16.msra.mxu0 0
    %546 = vmatprep.subr.bf16.mxu0 0
    %547 = vmatpush1.bf16.msra.mxu0 0
    %548 = vmatprep.subr.bf16.mxu0 0
    %549 = vmatpush1.bf16.msra.mxu0 0
    %550 = vmatprep.subr.bf16.mxu0 0
    %551 = vmatpush1.bf16.msra.mxu0 0
    %552 = vmatprep.subr.bf16.mxu0 0
    %553 = vmatpush1.bf16.msra.mxu0 0
    %554 = vmatprep.subr.bf16.mxu0 0
    %555 = vmatpush1.bf16.msra.mxu0 0
    %556 = vmatprep.subr.bf16.mxu0 0
    %557 = vmatpush1.bf16.msra.mxu0 0
    %558 = vmatprep.subr.bf16.mxu0 0
    %559 = vmatpush1.bf16.msra.mxu0 0
    %560 = vmatprep.subr.bf16.mxu0 0
    %561 = vmatpush1.bf16.msra.mxu0 0
    %562 = vmatprep.subr.bf16.mxu0 0
    %563 = vmatpush1.bf16.msra.mxu0 0
    %564 = vmatprep.subr.bf16.mxu0 0
    %565 = vmatpush1.bf16.msra.mxu0 0
    %566 = vmatprep.subr.bf16.mxu0 0
    %567 = vmatpush1.bf16.msra.mxu0 0
    %568 = vmatprep.subr.bf16.mxu0 0
    %569 = vmatpush1.bf16.msra.mxu0 0
    %570 = vmatprep.subr.bf16.mxu0 0
    %571 = vmatpush1.bf16.msra.mxu0 0
    %572 = vmatprep.mubr.bf16.mxu0 0
    %573 = vmatmul.mubr.bf16.gmra.mrb[0].mxu0 %v497
    %v574 = vpop.f32.mrb[0].mxu0
    %v575 = vadd.f32 %v262, %v574
    %v576 = vpop.f32.mrb[0].mxu0
    %v577 = vpop.f32.mrb[0].mxu0
    %v578 = vpop.f32.mrb[0].mxu0
    %579 = vdwg.mxu0
    %v582 = vrot.slane %v534, 6
    %v583 = vrot.slane %v536, 6
    %v586 = vadd.f32 %v170, %v582
    %v587 = vadd.f32 %v172, %v583
    %v588 = vxor.u32 %v586, 2147483648
    %v589 = vxor.u32 %v587, 2147483648
    %v590 = vmul.f32 %v588, 1.442695
    %v591 = vpow.pop %v590
    %v592 = vmul.f32 %v589, 1.442695
    %v593 = vpow.pop %v592
    %v594 = vadd.f32 %v591, 1.0
    %v595 = vadd.f32 %v593, 1.0
    %v596 = vrcp.pop %v594
    %v597 = vmul.f32 1.0, %v596
    %v598 = vrcp.pop %v595
    %v599 = vmul.f32 1.0, %v598
    %v601 = vrot.slane %v575, 6
    %v603 = vmul.f32 %v597, %v601
    %v604 = vadd.f32 %v211, %v603
    %v605 = vtanh.pop %v604
    %v606 = vsub.f32 1.0, %v599
    %v607 = vmul.f32 %v606, %v605
    %v609 = vrot.slane %v489, 7
    %v611 = vmul.f32 %v599, %v609
    %v612 = vadd.f32 %v607, %v611
    %vm613 = vcmask 256002
    %614 = vst.msk [vmem:[#allocation5] sm:$0x4] %vm613, %v612
    %v615 = vpack.c.bf16 %v612, %v612
    %v617 = vrot.slane %v615, 1
    %v619 = vsel %vm131, %v617, 0
    %621 = vmatprep.subr.bf16.mxu0 %v239
    %622 = vmatpush1.bf16.msra.mxu0 %v238
    %623 = vmatprep.subr.bf16.mxu0 %v242
    %624 = vmatpush1.bf16.msra.mxu0 %v241
    %625 = vmatprep.subr.bf16.mxu0 0
    %626 = vmatpush1.bf16.msra.mxu0 0
    %627 = vmatprep.subr.bf16.mxu0 0
    %628 = vmatpush1.bf16.msra.mxu0 0
    %629 = vmatprep.subr.bf16.mxu0 0
    %630 = vmatpush1.bf16.msra.mxu0 0
    %631 = vmatprep.subr.bf16.mxu0 0
    %632 = vmatpush1.bf16.msra.mxu0 0
    %633 = vmatprep.subr.bf16.mxu0 0
    %634 = vmatpush1.bf16.msra.mxu0 0
    %635 = vmatprep.subr.bf16.mxu0 0
    %636 = vmatpush1.bf16.msra.mxu0 0
    %637 = vmatprep.subr.bf16.mxu0 0
    %638 = vmatpush1.bf16.msra.mxu0 0
    %639 = vmatprep.subr.bf16.mxu0 0
    %640 = vmatpush1.bf16.msra.mxu0 0
    %641 = vmatprep.subr.bf16.mxu0 0
    %642 = vmatpush1.bf16.msra.mxu0 0
    %643 = vmatprep.subr.bf16.mxu0 0
    %644 = vmatpush1.bf16.msra.mxu0 0
    %645 = vmatprep.subr.bf16.mxu0 0
    %646 = vmatpush1.bf16.msra.mxu0 0
    %647 = vmatprep.subr.bf16.mxu0 0
    %648 = vmatpush1.bf16.msra.mxu0 0
    %649 = vmatprep.subr.bf16.mxu0 0
    %650 = vmatpush1.bf16.msra.mxu0 0
    %651 = vmatprep.subr.bf16.mxu0 0
    %652 = vmatpush1.bf16.msra.mxu0 0
    %653 = vmatprep.mubr.bf16.mxu0 0
    %654 = vmatmul.mubr.bf16.gmra.mrb[0].mxu0 %v619
    %v655 = vpop.f32.mrb[0].mxu0
    %v656 = vadd.f32 %v254, %v655
    %v657 = vpop.f32.mrb[0].mxu0
    %v658 = vadd.f32 %v258, %v657
    %v659 = vpop.f32.mrb[0].mxu0
    %v660 = vpop.f32.mrb[0].mxu0
    %661 = vdwg.mxu0
    %662 = vmatprep.subr.bf16.mxu0 0
    %663 = vmatpush1.bf16.msra.mxu0 %v240
    %664 = vmatprep.subr.bf16.mxu0 0
    %665 = vmatpush1.bf16.msra.mxu0 %v243
    %666 = vmatprep.subr.bf16.mxu0 0
    %667 = vmatpush1.bf16.msra.mxu0 0
    %668 = vmatprep.subr.bf16.mxu0 0
    %669 = vmatpush1.bf16.msra.mxu0 0
    %670 = vmatprep.subr.bf16.mxu0 0
    %671 = vmatpush1.bf16.msra.mxu0 0
    %672 = vmatprep.subr.bf16.mxu0 0
    %673 = vmatpush1.bf16.msra.mxu0 0
    %674 = vmatprep.subr.bf16.mxu0 0
    %675 = vmatpush1.bf16.msra.mxu0 0
    %676 = vmatprep.subr.bf16.mxu0 0
    %677 = vmatpush1.bf16.msra.mxu0 0
    %678 = vmatprep.subr.bf16.mxu0 0
    %679 = vmatpush1.bf16.msra.mxu0 0
    %680 = vmatprep.subr.bf16.mxu0 0
    %681 = vmatpush1.bf16.msra.mxu0 0
    %682 = vmatprep.subr.bf16.mxu0 0
    %683 = vmatpush1.bf16.msra.mxu0 0
    %684 = vmatprep.subr.bf16.mxu0 0
    %685 = vmatpush1.bf16.msra.mxu0 0
    %686 = vmatprep.subr.bf16.mxu0 0
    %687 = vmatpush1.bf16.msra.mxu0 0
    %688 = vmatprep.subr.bf16.mxu0 0
    %689 = vmatpush1.bf16.msra.mxu0 0
    %690 = vmatprep.subr.bf16.mxu0 0
    %691 = vmatpush1.bf16.msra.mxu0 0
    %692 = vmatprep.subr.bf16.mxu0 0
    %693 = vmatpush1.bf16.msra.mxu0 0
    %694 = vmatprep.mubr.bf16.mxu0 0
    %695 = vmatmul.mubr.bf16.gmra.mrb[0].mxu0 %v619
    %v696 = vpop.f32.mrb[0].mxu0
    %v697 = vadd.f32 %v262, %v696
    %v698 = vpop.f32.mrb[0].mxu0
    %v699 = vpop.f32.mrb[0].mxu0
    %v700 = vpop.f32.mrb[0].mxu0
    %701 = vdwg.mxu0
    %v704 = vrot.slane %v656, 5
    %v705 = vrot.slane %v658, 5
    %v708 = vadd.f32 %v170, %v704
    %v709 = vadd.f32 %v172, %v705
    %v710 = vxor.u32 %v708, 2147483648
    %v711 = vxor.u32 %v709, 2147483648
    %v712 = vmul.f32 %v710, 1.442695
    %v713 = vpow.pop %v712
    %v714 = vmul.f32 %v711, 1.442695
    %v715 = vpow.pop %v714
    %v716 = vadd.f32 %v713, 1.0
    %v717 = vadd.f32 %v715, 1.0
    %v718 = vrcp.pop %v716
    %v719 = vmul.f32 1.0, %v718
    %v720 = vrcp.pop %v717
    %v721 = vmul.f32 1.0, %v720
    %v723 = vrot.slane %v697, 5
    %v725 = vmul.f32 %v719, %v723
    %v726 = vadd.f32 %v211, %v725
    %v727 = vtanh.pop %v726
    %v728 = vsub.f32 1.0, %v721
    %v729 = vmul.f32 %v728, %v727
    %v731 = vrot.slane %v612, 7
    %v733 = vmul.f32 %v721, %v731
    %v734 = vadd.f32 %v729, %v733
    %vm735 = vcmask 257027
    %736 = vst.msk [vmem:[#allocation5] sm:$0x8] %vm735, %v734
    %v737 = vpack.c.bf16 %v734, %v734
    %v739 = vshrl.u32 %v737, 16
    %v741 = vrot.slane %v739, 1
    %v743 = vsel %vm131, %v741, 0
    %745 = vmatprep.subr.bf16.mxu0 %v239
    %746 = vmatpush1.bf16.msra.mxu0 %v238
    %747 = vmatprep.subr.bf16.mxu0 %v242
    %748 = vmatpush1.bf16.msra.mxu0 %v241
    %749 = vmatprep.subr.bf16.mxu0 0
    %750 = vmatpush1.bf16.msra.mxu0 0
    %751 = vmatprep.subr.bf16.mxu0 0
    %752 = vmatpush1.bf16.msra.mxu0 0
    %753 = vmatprep.subr.bf16.mxu0 0
    %754 = vmatpush1.bf16.msra.mxu0 0
    %755 = vmatprep.subr.bf16.mxu0 0
    %756 = vmatpush1.bf16.msra.mxu0 0
    %757 = vmatprep.subr.bf16.mxu0 0
    %758 = vmatpush1.bf16.msra.mxu0 0
    %759 = vmatprep.subr.bf16.mxu0 0
    %760 = vmatpush1.bf16.msra.mxu0 0
    %761 = vmatprep.subr.bf16.mxu0 0
    %762 = vmatpush1.bf16.msra.mxu0 0
    %763 = vmatprep.subr.bf16.mxu0 0
    %764 = vmatpush1.bf16.msra.mxu0 0
    %765 = vmatprep.subr.bf16.mxu0 0
    %766 = vmatpush1.bf16.msra.mxu0 0
    %767 = vmatprep.subr.bf16.mxu0 0
    %768 = vmatpush1.bf16.msra.mxu0 0
    %769 = vmatprep.subr.bf16.mxu0 0
    %770 = vmatpush1.bf16.msra.mxu0 0
    %771 = vmatprep.subr.bf16.mxu0 0
    %772 = vmatpush1.bf16.msra.mxu0 0
    %773 = vmatprep.subr.bf16.mxu0 0
    %774 = vmatpush1.bf16.msra.mxu0 0
    %775 = vmatprep.subr.bf16.mxu0 0
    %776 = vmatpush1.bf16.msra.mxu0 0
    %777 = vmatprep.mubr.bf16.mxu0 0
    %778 = vmatmul.mubr.bf16.gmra.mrb[0].mxu0 %v743
    %v779 = vpop.f32.mrb[0].mxu0
    %v780 = vadd.f32 %v254, %v779
    %v781 = vpop.f32.mrb[0].mxu0
    %v782 = vadd.f32 %v258, %v781
    %v783 = vpop.f32.mrb[0].mxu0
    %v784 = vpop.f32.mrb[0].mxu0
    %785 = vdwg.mxu0
    %786 = vmatprep.subr.bf16.mxu0 0
    %787 = vmatpush1.bf16.msra.mxu0 %v240
    %788 = vmatprep.subr.bf16.mxu0 0
    %789 = vmatpush1.bf16.msra.mxu0 %v243
    %790 = vmatprep.subr.bf16.mxu0 0
    %791 = vmatpush1.bf16.msra.mxu0 0
    %792 = vmatprep.subr.bf16.mxu0 0
    %793 = vmatpush1.bf16.msra.mxu0 0
    %794 = vmatprep.subr.bf16.mxu0 0
    %795 = vmatpush1.bf16.msra.mxu0 0
    %796 = vmatprep.subr.bf16.mxu0 0
    %797 = vmatpush1.bf16.msra.mxu0 0
    %798 = vmatprep.subr.bf16.mxu0 0
    %799 = vmatpush1.bf16.msra.mxu0 0
    %800 = vmatprep.subr.bf16.mxu0 0
    %801 = vmatpush1.bf16.msra.mxu0 0
    %802 = vmatprep.subr.bf16.mxu0 0
    %803 = vmatpush1.bf16.msra.mxu0 0
    %804 = vmatprep.subr.bf16.mxu0 0
    %805 = vmatpush1.bf16.msra.mxu0 0
    %806 = vmatprep.subr.bf16.mxu0 0
    %807 = vmatpush1.bf16.msra.mxu0 0
    %808 = vmatprep.subr.bf16.mxu0 0
    %809 = vmatpush1.bf16.msra.mxu0 0
    %810 = vmatprep.subr.bf16.mxu0 0
    %811 = vmatpush1.bf16.msra.mxu0 0
    %812 = vmatprep.subr.bf16.mxu0 0
    %813 = vmatpush1.bf16.msra.mxu0 0
    %814 = vmatprep.subr.bf16.mxu0 0
    %815 = vmatpush1.bf16.msra.mxu0 0
    %816 = vmatprep.subr.bf16.mxu0 0
    %817 = vmatpush1.bf16.msra.mxu0 0
    %818 = vmatprep.mubr.bf16.mxu0 0
    %819 = vmatmul.mubr.bf16.gmra.mrb[0].mxu0 %v743
    %v820 = vpop.f32.mrb[0].mxu0
    %v821 = vadd.f32 %v262, %v820
    %v822 = vpop.f32.mrb[0].mxu0
    %v823 = vpop.f32.mrb[0].mxu0
    %v824 = vpop.f32.mrb[0].mxu0
    %825 = vdwg.mxu0
    %v828 = vrot.slane %v780, 4
    %v829 = vrot.slane %v782, 4
    %v832 = vadd.f32 %v170, %v828
    %v833 = vadd.f32 %v172, %v829
    %v834 = vxor.u32 %v832, 2147483648
    %v835 = vxor.u32 %v833, 2147483648
    %v836 = vmul.f32 %v834, 1.442695
    %v837 = vpow.pop %v836
    %v838 = vmul.f32 %v835, 1.442695
    %v839 = vpow.pop %v838
    %v840 = vadd.f32 %v837, 1.0
    %v841 = vadd.f32 %v839, 1.0
    %v842 = vrcp.pop %v840
    %v843 = vmul.f32 1.0, %v842
    %v844 = vrcp.pop %v841
    %v845 = vmul.f32 1.0, %v844
    %v847 = vrot.slane %v821, 4
    %v849 = vmul.f32 %v843, %v847
    %v850 = vadd.f32 %v211, %v849
    %v851 = vtanh.pop %v850
    %v852 = vsub.f32 1.0, %v845
    %v853 = vmul.f32 %v852, %v851
    %v855 = vrot.slane %v734, 7
    %v857 = vmul.f32 %v845, %v855
    %v858 = vadd.f32 %v853, %v857
    %vm859 = vcmask 258052
    %860 = vst.msk [vmem:[#allocation5] sm:$0x10] %vm859, %v858
    %v861 = vpack.c.bf16 %v858, %v858
    %v863 = vrot.slane %v861, 2
    %v865 = vsel %vm131, %v863, 0
    %867 = vmatprep.subr.bf16.mxu0 %v239
    %868 = vmatpush1.bf16.msra.mxu0 %v238
    %869 = vmatprep.subr.bf16.mxu0 %v242
    %870 = vmatpush1.bf16.msra.mxu0 %v241
    %871 = vmatprep.subr.bf16.mxu0 0
    %872 = vmatpush1.bf16.msra.mxu0 0
    %873 = vmatprep.subr.bf16.mxu0 0
    %874 = vmatpush1.bf16.msra.mxu0 0
    %875 = vmatprep.subr.bf16.mxu0 0
    %876 = vmatpush1.bf16.msra.mxu0 0
    %877 = vmatprep.subr.bf16.mxu0 0
    %878 = vmatpush1.bf16.msra.mxu0 0
    %879 = vmatprep.subr.bf16.mxu0 0
    %880 = vmatpush1.bf16.msra.mxu0 0
    %881 = vmatprep.subr.bf16.mxu0 0
    %882 = vmatpush1.bf16.msra.mxu0 0
    %883 = vmatprep.subr.bf16.mxu0 0
    %884 = vmatpush1.bf16.msra.mxu0 0
    %885 = vmatprep.subr.bf16.mxu0 0
    %886 = vmatpush1.bf16.msra.mxu0 0
    %887 = vmatprep.subr.bf16.mxu0 0
    %888 = vmatpush1.bf16.msra.mxu0 0
    %889 = vmatprep.subr.bf16.mxu0 0
    %890 = vmatpush1.bf16.msra.mxu0 0
    %891 = vmatprep.subr.bf16.mxu0 0
    %892 = vmatpush1.bf16.msra.mxu0 0
    %893 = vmatprep.subr.bf16.mxu0 0
    %894 = vmatpush1.bf16.msra.mxu0 0
    %895 = vmatprep.subr.bf16.mxu0 0
    %896 = vmatpush1.bf16.msra.mxu0 0
    %897 = vmatprep.subr.bf16.mxu0 0
    %898 = vmatpush1.bf16.msra.mxu0 0
    %899 = vmatprep.mubr.bf16.mxu0 0
    %900 = vmatmul.mubr.bf16.gmra.mrb[0].mxu0 %v865
    %v901 = vpop.f32.mrb[0].mxu0
    %v902 = vadd.f32 %v254, %v901
    %v903 = vpop.f32.mrb[0].mxu0
    %v904 = vadd.f32 %v258, %v903
    %v905 = vpop.f32.mrb[0].mxu0
    %v906 = vpop.f32.mrb[0].mxu0
    %907 = vdwg.mxu0
    %908 = vmatprep.subr.bf16.mxu0 0
    %909 = vmatpush1.bf16.msra.mxu0 %v240
    %910 = vmatprep.subr.bf16.mxu0 0
    %911 = vmatpush1.bf16.msra.mxu0 %v243
    %912 = vmatprep.subr.bf16.mxu0 0
    %913 = vmatpush1.bf16.msra.mxu0 0
    %914 = vmatprep.subr.bf16.mxu0 0
    %915 = vmatpush1.bf16.msra.mxu0 0
    %916 = vmatprep.subr.bf16.mxu0 0
    %917 = vmatpush1.bf16.msra.mxu0 0
    %918 = vmatprep.subr.bf16.mxu0 0
    %919 = vmatpush1.bf16.msra.mxu0 0
    %920 = vmatprep.subr.bf16.mxu0 0
    %921 = vmatpush1.bf16.msra.mxu0 0
    %922 = vmatprep.subr.bf16.mxu0 0
    %923 = vmatpush1.bf16.msra.mxu0 0
    %924 = vmatprep.subr.bf16.mxu0 0
    %925 = vmatpush1.bf16.msra.mxu0 0
    %926 = vmatprep.subr.bf16.mxu0 0
    %927 = vmatpush1.bf16.msra.mxu0 0
    %928 = vmatprep.subr.bf16.mxu0 0
    %929 = vmatpush1.bf16.msra.mxu0 0
    %930 = vmatprep.subr.bf16.mxu0 0
    %931 = vmatpush1.bf16.msra.mxu0 0
    %932 = vmatprep.subr.bf16.mxu0 0
    %933 = vmatpush1.bf16.msra.mxu0 0
    %934 = vmatprep.subr.bf16.mxu0 0
    %935 = vmatpush1.bf16.msra.mxu0 0
    %936 = vmatprep.subr.bf16.mxu0 0
    %937 = vmatpush1.bf16.msra.mxu0 0
    %938 = vmatprep.subr.bf16.mxu0 0
    %939 = vmatpush1.bf16.msra.mxu0 0
    %940 = vmatprep.mubr.bf16.mxu0 0
    %941 = vmatmul.mubr.bf16.gmra.mrb[0].mxu0 %v865
    %v942 = vpop.f32.mrb[0].mxu0
    %v943 = vadd.f32 %v262, %v942
    %v944 = vpop.f32.mrb[0].mxu0
    %v945 = vpop.f32.mrb[0].mxu0
    %v946 = vpop.f32.mrb[0].mxu0
    %947 = vdwg.mxu0
    %v950 = vrot.slane %v902, 3
    %v951 = vrot.slane %v904, 3
    %v954 = vadd.f32 %v170, %v950
    %v955 = vadd.f32 %v172, %v951
    %v956 = vxor.u32 %v954, 2147483648
    %v957 = vxor.u32 %v955, 2147483648
    %v958 = vmul.f32 %v956, 1.442695
    %v959 = vpow.pop %v958
    %v960 = vmul.f32 %v957, 1.442695
    %v961 = vpow.pop %v960
    %v962 = vadd.f32 %v959, 1.0
    %v963 = vadd.f32 %v961, 1.0
    %v964 = vrcp.pop %v962
    %v965 = vmul.f32 1.0, %v964
    %v966 = vrcp.pop %v963
    %v967 = vmul.f32 1.0, %v966
    %v969 = vrot.slane %v943, 3
    %v971 = vmul.f32 %v965, %v969
    %v972 = vadd.f32 %v211, %v971
    %v973 = vtanh.pop %v972
    %v974 = vsub.f32 1.0, %v967
    %v975 = vmul.f32 %v974, %v973
    %v977 = vrot.slane %v858, 7
    %v979 = vmul.f32 %v967, %v977
    %v980 = vadd.f32 %v975, %v979
    %vm981 = vcmask 259077
    %982 = vst.msk [vmem:[#allocation5] sm:$0x20] %vm981, %v980
    %v983 = vpack.c.bf16 %v980, %v980
    %v985 = vshrl.u32 %v983, 16
    %v987 = vrot.slane %v985, 2
    %v989 = vsel %vm131, %v987, 0
    %991 = vmatprep.subr.bf16.mxu0 %v239
    %992 = vmatpush1.bf16.msra.mxu0 %v238
    %993 = vmatprep.subr.bf16.mxu0 %v242
    %994 = vmatpush1.bf16.msra.mxu0 %v241
    %995 = vmatprep.subr.bf16.mxu0 0
    %996 = vmatpush1.bf16.msra.mxu0 0
    %997 = vmatprep.subr.bf16.mxu0 0
    %998 = vmatpush1.bf16.msra.mxu0 0
    %999 = vmatprep.subr.bf16.mxu0 0
    %1000 = vmatpush1.bf16.msra.mxu0 0
    %1001 = vmatprep.subr.bf16.mxu0 0
    %1002 = vmatpush1.bf16.msra.mxu0 0
    %1003 = vmatprep.subr.bf16.mxu0 0
    %1004 = vmatpush1.bf16.msra.mxu0 0
    %1005 = vmatprep.subr.bf16.mxu0 0
    %1006 = vmatpush1.bf16.msra.mxu0 0
    %1007 = vmatprep.subr.bf16.mxu0 0
    %1008 = vmatpush1.bf16.msra.mxu0 0
    %1009 = vmatprep.subr.bf16.mxu0 0
    %1010 = vmatpush1.bf16.msra.mxu0 0
    %1011 = vmatprep.subr.bf16.mxu0 0
    %1012 = vmatpush1.bf16.msra.mxu0 0
    %1013 = vmatprep.subr.bf16.mxu0 0
    %1014 = vmatpush1.bf16.msra.mxu0 0
    %1015 = vmatprep.subr.bf16.mxu0 0
    %1016 = vmatpush1.bf16.msra.mxu0 0
    %1017 = vmatprep.subr.bf16.mxu0 0
    %1018 = vmatpush1.bf16.msra.mxu0 0
    %1019 = vmatprep.subr.bf16.mxu0 0
    %1020 = vmatpush1.bf16.msra.mxu0 0
    %1021 = vmatprep.subr.bf16.mxu0 0
    %1022 = vmatpush1.bf16.msra.mxu0 0
    %1023 = vmatprep.mubr.bf16.mxu0 0
    %1024 = vmatmul.mubr.bf16.gmra.mrb[0].mxu0 %v989
    %v1025 = vpop.f32.mrb[0].mxu0
    %v1026 = vadd.f32 %v254, %v1025
    %v1027 = vpop.f32.mrb[0].mxu0
    %v1028 = vadd.f32 %v258, %v1027
    %v1029 = vpop.f32.mrb[0].mxu0
    %v1030 = vpop.f32.mrb[0].mxu0
    %1031 = vdwg.mxu0
    %1032 = vmatprep.subr.bf16.mxu0 0
    %1033 = vmatpush1.bf16.msra.mxu0 %v240
    %1034 = vmatprep.subr.bf16.mxu0 0
    %1035 = vmatpush1.bf16.msra.mxu0 %v243
    %1036 = vmatprep.subr.bf16.mxu0 0
    %1037 = vmatpush1.bf16.msra.mxu0 0
    %1038 = vmatprep.subr.bf16.mxu0 0
    %1039 = vmatpush1.bf16.msra.mxu0 0
    %1040 = vmatprep.subr.bf16.mxu0 0
    %1041 = vmatpush1.bf16.msra.mxu0 0
    %1042 = vmatprep.subr.bf16.mxu0 0
    %1043 = vmatpush1.bf16.msra.mxu0 0
    %1044 = vmatprep.subr.bf16.mxu0 0
    %1045 = vmatpush1.bf16.msra.mxu0 0
    %1046 = vmatprep.subr.bf16.mxu0 0
    %1047 = vmatpush1.bf16.msra.mxu0 0
    %1048 = vmatprep.subr.bf16.mxu0 0
    %1049 = vmatpush1.bf16.msra.mxu0 0
    %1050 = vmatprep.subr.bf16.mxu0 0
    %1051 = vmatpush1.bf16.msra.mxu0 0
    %1052 = vmatprep.subr.bf16.mxu0 0
    %1053 = vmatpush1.bf16.msra.mxu0 0
    %1054 = vmatprep.subr.bf16.mxu0 0
    %1055 = vmatpush1.bf16.msra.mxu0 0
    %1056 = vmatprep.subr.bf16.mxu0 0
    %1057 = vmatpush1.bf16.msra.mxu0 0
    %1058 = vmatprep.subr.bf16.mxu0 0
    %1059 = vmatpush1.bf16.msra.mxu0 0
    %1060 = vmatprep.subr.bf16.mxu0 0
    %1061 = vmatpush1.bf16.msra.mxu0 0
    %1062 = vmatprep.subr.bf16.mxu0 0
    %1063 = vmatpush1.bf16.msra.mxu0 0
    %1064 = vmatprep.mubr.bf16.mxu0 0
    %1065 = vmatmul.mubr.bf16.gmra.mrb[0].mxu0 %v989
    %v1066 = vpop.f32.mrb[0].mxu0
    %v1067 = vadd.f32 %v262, %v1066
    %v1068 = vpop.f32.mrb[0].mxu0
    %v1069 = vpop.f32.mrb[0].mxu0
    %v1070 = vpop.f32.mrb[0].mxu0
    %1071 = vdwg.mxu0
    %v1074 = vrot.slane %v1026, 2
    %v1075 = vrot.slane %v1028, 2
    %v1078 = vadd.f32 %v170, %v1074
    %v1079 = vadd.f32 %v172, %v1075
    %v1080 = vxor.u32 %v1078, 2147483648
    %v1081 = vxor.u32 %v1079, 2147483648
    %v1082 = vmul.f32 %v1080, 1.442695
    %v1083 = vpow.pop %v1082
    %v1084 = vmul.f32 %v1081, 1.442695
    %v1085 = vpow.pop %v1084
    %v1086 = vadd.f32 %v1083, 1.0
    %v1087 = vadd.f32 %v1085, 1.0
    %v1088 = vrcp.pop %v1086
    %v1089 = vmul.f32 1.0, %v1088
    %v1090 = vrcp.pop %v1087
    %v1091 = vmul.f32 1.0, %v1090
    %v1093 = vrot.slane %v1067, 2
    %v1095 = vmul.f32 %v1089, %v1093
    %v1096 = vadd.f32 %v211, %v1095
    %v1097 = vtanh.pop %v1096
    %v1098 = vsub.f32 1.0, %v1091
    %v1099 = vmul.f32 %v1098, %v1097
    %v1101 = vrot.slane %v980, 7
    %v1103 = vmul.f32 %v1091, %v1101
    %v1104 = vadd.f32 %v1099, %v1103
    %vm1105 = vcmask 260102
    %1106 = vst.msk [vmem:[#allocation5] sm:$0x40] %vm1105, %v1104
    %v1107 = vpack.c.bf16 %v1104, %v1104
    %v1109 = vrot.slane %v1107, 3
    %v1111 = vsel %vm131, %v1109, 0
    %1113 = vmatprep.subr.bf16.mxu0 %v239
    %1114 = vmatpush1.bf16.msra.mxu0 %v238
    %1115 = vmatprep.subr.bf16.mxu0 %v242
    %1116 = vmatpush1.bf16.msra.mxu0 %v241
    %1117 = vmatprep.subr.bf16.mxu0 0
    %1118 = vmatpush1.bf16.msra.mxu0 0
    %1119 = vmatprep.subr.bf16.mxu0 0
    %1120 = vmatpush1.bf16.msra.mxu0 0
    %1121 = vmatprep.subr.bf16.mxu0 0
    %1122 = vmatpush1.bf16.msra.mxu0 0
    %1123 = vmatprep.subr.bf16.mxu0 0
    %1124 = vmatpush1.bf16.msra.mxu0 0
    %1125 = vmatprep.subr.bf16.mxu0 0
    %1126 = vmatpush1.bf16.msra.mxu0 0
    %1127 = vmatprep.subr.bf16.mxu0 0
    %1128 = vmatpush1.bf16.msra.mxu0 0
    %1129 = vmatprep.subr.bf16.mxu0 0
    %1130 = vmatpush1.bf16.msra.mxu0 0
    %1131 = vmatprep.subr.bf16.mxu0 0
    %1132 = vmatpush1.bf16.msra.mxu0 0
    %1133 = vmatprep.subr.bf16.mxu0 0
    %1134 = vmatpush1.bf16.msra.mxu0 0
    %1135 = vmatprep.subr.bf16.mxu0 0
    %1136 = vmatpush1.bf16.msra.mxu0 0
    %1137 = vmatprep.subr.bf16.mxu0 0
    %1138 = vmatpush1.bf16.msra.mxu0 0
    %1139 = vmatprep.subr.bf16.mxu0 0
    %1140 = vmatpush1.bf16.msra.mxu0 0
    %1141 = vmatprep.subr.bf16.mxu0 0
    %1142 = vmatpush1.bf16.msra.mxu0 0
    %1143 = vmatprep.subr.bf16.mxu0 0
    %1144 = vmatpush1.bf16.msra.mxu0 0
    %1145 = vmatprep.mubr.bf16.mxu0 0
    %1146 = vmatmul.mubr.bf16.gmra.mrb[0].mxu0 %v1111
    %v1147 = vpop.f32.mrb[0].mxu0
    %v1148 = vadd.f32 %v254, %v1147
    %v1149 = vpop.f32.mrb[0].mxu0
    %v1150 = vadd.f32 %v258, %v1149
    %v1151 = vpop.f32.mrb[0].mxu0
    %v1152 = vpop.f32.mrb[0].mxu0
    %1153 = vdwg.mxu0
    %1154 = vmatprep.subr.bf16.mxu0 0
    %1155 = vmatpush1.bf16.msra.mxu0 %v240
    %1156 = vmatprep.subr.bf16.mxu0 0
    %1157 = vmatpush1.bf16.msra.mxu0 %v243
    %1158 = vmatprep.subr.bf16.mxu0 0
    %1159 = vmatpush1.bf16.msra.mxu0 0
    %1160 = vmatprep.subr.bf16.mxu0 0
    %1161 = vmatpush1.bf16.msra.mxu0 0
    %1162 = vmatprep.subr.bf16.mxu0 0
    %1163 = vmatpush1.bf16.msra.mxu0 0
    %1164 = vmatprep.subr.bf16.mxu0 0
    %1165 = vmatpush1.bf16.msra.mxu0 0
    %1166 = vmatprep.subr.bf16.mxu0 0
    %1167 = vmatpush1.bf16.msra.mxu0 0
    %1168 = vmatprep.subr.bf16.mxu0 0
    %1169 = vmatpush1.bf16.msra.mxu0 0
    %1170 = vmatprep.subr.bf16.mxu0 0
    %1171 = vmatpush1.bf16.msra.mxu0 0
    %1172 = vmatprep.subr.bf16.mxu0 0
    %1173 = vmatpush1.bf16.msra.mxu0 0
    %1174 = vmatprep.subr.bf16.mxu0 0
    %1175 = vmatpush1.bf16.msra.mxu0 0
    %1176 = vmatprep.subr.bf16.mxu0 0
    %1177 = vmatpush1.bf16.msra.mxu0 0
    %1178 = vmatprep.subr.bf16.mxu0 0
    %1179 = vmatpush1.bf16.msra.mxu0 0
    %1180 = vmatprep.subr.bf16.mxu0 0
    %1181 = vmatpush1.bf16.msra.mxu0 0
    %1182 = vmatprep.subr.bf16.mxu0 0
    %1183 = vmatpush1.bf16.msra.mxu0 0
    %1184 = vmatprep.subr.bf16.mxu0 0
    %1185 = vmatpush1.bf16.msra.mxu0 0
    %1186 = vmatprep.mubr.bf16.mxu0 0
    %1187 = vmatmul.mubr.bf16.gmra.mrb[0].mxu0 %v1111
    %v1188 = vpop.f32.mrb[0].mxu0
    %v1189 = vadd.f32 %v262, %v1188
    %v1190 = vpop.f32.mrb[0].mxu0
    %v1191 = vpop.f32.mrb[0].mxu0
    %v1192 = vpop.f32.mrb[0].mxu0
    %1193 = vdwg.mxu0
    %v1196 = vrot.slane %v1148, 1
    %v1197 = vrot.slane %v1150, 1
    %v1200 = vadd.f32 %v170, %v1196
    %v1201 = vadd.f32 %v172, %v1197
    %v1202 = vxor.u32 %v1200, 2147483648
    %v1203 = vxor.u32 %v1201, 2147483648
    %v1204 = vmul.f32 %v1202, 1.442695
    %v1205 = vpow.pop %v1204
    %v1206 = vmul.f32 %v1203, 1.442695
    %v1207 = vpow.pop %v1206
    %v1208 = vadd.f32 %v1205, 1.0
    %v1209 = vadd.f32 %v1207, 1.0
    %v1210 = vrcp.pop %v1208
    %v1211 = vmul.f32 1.0, %v1210
    %v1212 = vrcp.pop %v1209
    %v1213 = vmul.f32 1.0, %v1212
    %v1215 = vrot.slane %v1189, 1
    %v1217 = vmul.f32 %v1211, %v1215
    %v1218 = vadd.f32 %v211, %v1217
    %v1219 = vtanh.pop %v1218
    %v1220 = vsub.f32 1.0, %v1213
    %v1221 = vmul.f32 %v1220, %v1219
    %v1223 = vrot.slane %v1104, 7
    %v1225 = vmul.f32 %v1213, %v1223
    %v1226 = vadd.f32 %v1221, %v1225
    %vm1227 = vcmask 261127
    %1228 = vst.msk [vmem:[#allocation5] sm:$0x80] %vm1227, %v1226
    %1229 = vst.msk [vmem:[#allocation7 - $0x7] sm:$0x80] %vm1227, %v1226
    // Predicated region
    $region18: #{encoder_rnn_forward.1} parent=1 // pred_check
      _
    $region19: #{encoder_rnn_forward.1} parent=1 // pred_check_branch
      %1231 = sbr.rel (0) target = $region21
    $region20: #{encoder_rnn_forward.1} parent=1 // pred_region
      %s1233 = ssub.s32 128, 128
      %1234 = vsyncadd [#allocation6], %s1233
      %s1236 = sshll.u32 [#allocation5], 4
      %s1237 = int_to_ptr.vmem [resolvable:$true] %s1236
      %1239 = dma.vmem_to_hbm [thread:$0]  %s1237, 128, %s5, [#allocation6]
    $region21: #{encoder_rnn_forward.1} parent=1 // pred_fallthru
      _
    // Predicated region
    $region22: #{encoder_rnn_forward.1} parent=1 // pred_check
      _
    $region23: #{encoder_rnn_forward.1} parent=1 // pred_check_branch
      %1241 = sbr.rel (0) target = $region25
    $region24: #{encoder_rnn_forward.1} parent=1 // pred_region
      %s1243 = ssub.s32 16, 16
      %1244 = vsyncadd [#allocation8], %s1243
      %s1246 = sshll.u32 [#allocation7], 4
      %s1247 = int_to_ptr.vmem [resolvable:$true] %s1246
      %1249 = dma.vmem_to_hbm [thread:$0]  %s1247, 16, %s6, [#allocation8]
    $region25: #{encoder_rnn_forward.1} parent=1 // pred_fallthru
      _
    // Predicated region
    $region26: #{encoder_rnn_forward.1} parent=1 // pred_check
      _
    $region27: #{encoder_rnn_forward.1} parent=1 // pred_check_branch
      %1251 = sbr.rel (0) target = $region29
    $region28: #{encoder_rnn_forward.1} parent=1 // pred_region
      %1252 = dma.done [#allocation6], 128
    $region29: #{encoder_rnn_forward.1} parent=1 // pred_fallthru
      _
    // Predicated region
    $region30: #{encoder_rnn_forward.1} parent=1 // pred_check
      _
    $region31: #{encoder_rnn_forward.1} parent=1 // pred_check_branch
      %1254 = sbr.rel (0) target = $region33
    $region32: #{encoder_rnn_forward.1} parent=1 // pred_region
      %1255 = dma.done [#allocation8], 16
    $region33: #{encoder_rnn_forward.1} parent=1 // pred_fallthru
      _
    %1256 = vsyncpa [#allocation6], 1
    %1257 = vsyncpa [#allocation8], 1

</llo_original>
